<compile_context>
chip_gen: v6e
topology: v6e:2x2x1
jax: 0.10.0
libtpu: 0.0.40
codegen_flags: <defaults>
</compile_context>

<pallas_src>
import functools

import jax
import jax.numpy as jnp
from jax.experimental import pallas as pl
from jax.experimental.pallas import tpu as pltpu

LN_EPS = 1e-5     # PyTorch nn.LayerNorm default eps
LANE = 128
SUBLANE = 8


def _ceil_to(x, m):
    return ((x + m - 1) // m) * m


def _layer_norm(x):
    """LayerNorm(elementwise_affine=False) over the last axis (dense lanes)."""
    mu = jnp.mean(x, axis=-1, keepdims=True)
    d = x - mu
    var = jnp.mean(d * d, axis=-1, keepdims=True)
    return d * jax.lax.rsqrt(var + LN_EPS)


def tree_lstm_kernel(hl_ref, hr_ref, ft_ref, cl_ref, cr_ref, w_ref, b_ref,
                     out_ref, *, hidden_size, input_size, kp):
    """One row-tile (b_tile tree nodes) of the TreeLSTM forward.

    hl/hr/cl/cr_ref : (b_tile, H)   f32
    ft_ref          : (b_tile, IN)  f32
    w_ref           : (KP, GP3)     bf16  dense block-diagonal fused weight (resident)
    b_ref           : (1, GP3)      f32   fused bias (resident)
    out_ref         : (b_tile, OUT_W) f32 [h | c | 0-pad]
    """
    H = hidden_size
    G = 5 * H                       # dense lanes per Linear output
    bt = hl_ref.shape[0]

    # --- assemble the fused matmul operand inside the kernel ----------------
    # [h_left | h_right | feature | 0-pad] -> (bt, KP) bf16.  The pad lanes are
    # explicitly zeroed so no invariant on uninitialized data is needed.
    pad = kp - (2 * H + input_size)
    x = jnp.concatenate(
        [hl_ref[...], hr_ref[...], ft_ref[...],
         jnp.zeros((bt, pad), jnp.float32)],
        axis=-1).astype(jnp.bfloat16)

    # --- one fused block-diagonal MXU matmul replaces fc_left/fc_right/fc_input
    z = jnp.dot(x, w_ref[...], preferred_element_type=jnp.float32)
    z = z + b_ref[...]                                   # (bt, GP3) f32

    # Dense packing => each Linear's 5H outputs are contiguous and fully real,
    # so the three LayerNorms are mask-free.
    lstm_in = (_layer_norm(z[:, 0 * G:1 * G])            # layer_norm_left
               + _layer_norm(z[:, 1 * G:2 * G])          # layer_norm_right
               + _layer_norm(z[:, 2 * G:3 * G]))         # layer_norm_input

    # chunk(5, dim=1): a | i | f1 | f2 | o.  One sigmoid over the contiguous
    # i..o span (4H lanes) instead of four separate EUP calls.
    a = lstm_in[:, 0:H]
    s = jax.nn.sigmoid(lstm_in[:, H:5 * H])
    i, f1, f2, o = (s[:, k * H:(k + 1) * H] for k in range(4))

    c = jnp.tanh(a) * i + f1 * cl_ref[...] + f2 * cr_ref[...]
    c = _layer_norm(c)                                   # layer_norm_c
    h = o * jnp.tanh(c)

    # One lane-dense 128-wide store of the [h | c | pad] slab (unmasked vst).
    out_w = out_ref.shape[1]
    out_ref[...] = jnp.concatenate(
        [h, c, jnp.zeros((bt, out_w - 2 * H), jnp.float32)], axis=-1)


def _pick_b_tile(batch, *, max_tile=512):
    """Row-tile size: as large as possible (HBM roofline / MXU M-fill) while
    keeping >= 2 grid steps so v7x's two TensorCores both get work."""
    if batch <= 2 * SUBLANE:
        return _ceil_to(max(batch, SUBLANE), SUBLANE)
    return min(max_tile, _ceil_to(pl.cdiv(batch, 2), SUBLANE))


def tree_lstm_forward(h_left, c_left, h_right, c_right, feature, packed,
                      *, max_b_tile=512):
    """Batched TreeLSTM forward over B tree nodes. Returns (h, c): (B, H)."""
    B, H = h_left.shape
    IN = feature.shape[1]
    KP = packed["w"].shape[0]
    GP3 = packed["w"].shape[1]
    out_w = packed["out_w"]

    b_tile = _pick_b_tile(B, max_tile=max_b_tile)
    grid = (pl.cdiv(B, b_tile),)     # partial edge tiles handled by Pallas

    row_spec_h = pl.BlockSpec((b_tile, H), lambda n: (n, 0))
    row_spec_f = pl.BlockSpec((b_tile, IN), lambda n: (n, 0))

    out = pl.pallas_call(
        functools.partial(tree_lstm_kernel,
                          hidden_size=H, input_size=IN, kp=KP),
        out_shape=jax.ShapeDtypeStruct((B, out_w), jnp.float32),
        grid_spec=pltpu.PrefetchScalarGridSpec(
            num_scalar_prefetch=0,
            grid=grid,
            in_specs=[
                row_spec_h,                                  # h_left
                row_spec_h,                                  # h_right
                row_spec_f,                                  # feature
                row_spec_h,                                  # c_left
                row_spec_h,                                  # c_right
                pl.BlockSpec((KP, GP3), lambda n: (0, 0)),   # resident fused W
                pl.BlockSpec((1, GP3), lambda n: (0, 0)),    # resident fused b
            ],
            out_specs=pl.BlockSpec((b_tile, out_w), lambda n: (n, 0)),
        ),
        compiler_params=pltpu.CompilerParams(
            dimension_semantics=("parallel",)),   # split row tiles across TCs
    )(h_left, h_right, feature, c_left, c_right, packed["w"], packed["b"])

    h = out[:, 0:H]
    c = out[:, H:2 * H]
    return h, c


def init_params(key, input_size, hidden_size):
    """PyTorch-style raw params: W (5H, fan_in), b (5H,) per Linear."""
    ks = jax.random.split(key, 6)
    H5 = 5 * hidden_size

    def linear(kw, kb, fan_in):
        bound = 1.0 / jnp.sqrt(jnp.float32(fan_in))
        w = jax.random.uniform(kw, (H5, fan_in), jnp.float32, -bound, bound)
        b = jax.random.uniform(kb, (H5,), jnp.float32, -bound, bound)
        return w, b

    wl, bl = linear(ks[0], ks[1], hidden_size)
    wr, br = linear(ks[2], ks[3], hidden_size)
    wi, bi = linear(ks[4], ks[5], input_size)
    return {"wl": wl, "bl": bl, "wr": wr, "br": br, "wi": wi, "bi": bi}


def pack_params(raw, input_size, hidden_size):
    """Fused block-diagonal weight with DENSE gate packing.

    Layout: rows [0,H)->h_left, [H,2H)->h_right, [2H,2H+IN)->feature;
    columns [0,5H)=fc_left out, [5H,10H)=fc_right out, [10H,15H)=fc_input out,
    a single trailing zero pad brings the width to a lane multiple.
    """
    H, IN = hidden_size, input_size
    G = 5 * H
    GP3 = _ceil_to(3 * G, LANE)
    KP = _ceil_to(2 * H + IN, LANE)

    w_big = jnp.zeros((KP, GP3), jnp.float32)
    b_big = jnp.zeros((1, GP3), jnp.float32)

    def place(w_big, b_big, w, b, row_off, col_off):
        wt = w.T                                  # (fan_in, 5H)
        fan_in = wt.shape[0]
        w_big = w_big.at[row_off:row_off + fan_in, col_off:col_off + G].set(wt)
        b_big = b_big.at[0, col_off:col_off + G].set(b)
        return w_big, b_big

    w_big, b_big = place(w_big, b_big, raw["wl"], raw["bl"], 0, 0)
    w_big, b_big = place(w_big, b_big, raw["wr"], raw["br"], H, G)
    w_big, b_big = place(w_big, b_big, raw["wi"], raw["bi"], 2 * H, 2 * G)

    out_w = max(_ceil_to(2 * H, LANE), LANE)      # lane-dense [h|c] output slab
    return {"w": w_big.astype(jnp.bfloat16), "b": b_big, "out_w": out_w}


def _layer_norm_ref(x):
    mu = jnp.mean(x, axis=-1, keepdims=True)
    var = jnp.mean((x - mu) ** 2, axis=-1, keepdims=True)
    return (x - mu) * jax.lax.rsqrt(var + LN_EPS)


def reference_forward(h_left, c_left, h_right, c_right, feature, raw):
    """Pure-JAX f32 reference of the PyTorch forward."""
    lstm_in = (_layer_norm_ref(h_left @ raw["wl"].T + raw["bl"])
               + _layer_norm_ref(h_right @ raw["wr"].T + raw["br"])
               + _layer_norm_ref(feature @ raw["wi"].T + raw["bi"]))
    H = h_left.shape[1]
    a, i, f1, f2, o = (lstm_in[:, k * H:(k + 1) * H] for k in range(5))
    c = (jnp.tanh(a) * jax.nn.sigmoid(i)
         + jax.nn.sigmoid(f1) * c_left
         + jax.nn.sigmoid(f2) * c_right)
    c = _layer_norm_ref(c)
    h = jax.nn.sigmoid(o) * jnp.tanh(c)
    return h, c


if __name__ == "__main__":
    # B = number of tree nodes processed in one batched call.
    B, IN, H = 200, 32, 32

    key = jax.random.PRNGKey(0)
    k_in, k_par = jax.random.split(key)
    ki = jax.random.split(k_in, 5)

    h_left  = jax.random.normal(ki[0], (B, H),  jnp.float32)
    c_left  = jax.random.normal(ki[1], (B, H),  jnp.float32)
    h_right = jax.random.normal(ki[2], (B, H),  jnp.float32)
    c_right = jax.random.normal(ki[3], (B, H),  jnp.float32)
    feature = jax.random.normal(ki[4], (B, IN), jnp.float32)

    raw = init_params(k_par, IN, H)
    packed = pack_params(raw, IN, H)

    h_out, c_out = tree_lstm_forward(h_left, c_left, h_right, c_right,
                                     feature, packed)
    jax.block_until_ready((h_out, c_out))

    # correctness vs f32 pure-JAX reference (kernel matmul is bf16 -> looser tol)
    h_ref, c_ref = reference_forward(h_left, c_left, h_right, c_right,
                                     feature, raw)
    assert h_out.shape == (B, H) and c_out.shape == (B, H)
    assert jnp.allclose(h_out, h_ref, atol=5e-2, rtol=5e-2)
    assert jnp.allclose(c_out, c_ref, atol=5e-2, rtol=5e-2)

    print("KERNEL_OK")
</pallas_src>

<mosaic_0001>
module attributes {stable_mosaic.version = 11 : i64} {
  func.func @tree_lstm_kernel(%arg0: i32, %arg1: memref<104x32xf32, #tpu.memory_space<vmem>>, %arg2: memref<104x32xf32, #tpu.memory_space<vmem>>, %arg3: memref<104x32xf32, #tpu.memory_space<vmem>>, %arg4: memref<104x32xf32, #tpu.memory_space<vmem>>, %arg5: memref<104x32xf32, #tpu.memory_space<vmem>>, %arg6: memref<128x512xbf16, #tpu.memory_space<vmem>>, %arg7: memref<1x512xf32, #tpu.memory_space<vmem>>, %arg8: memref<104x128xf32, #tpu.memory_space<vmem>>) attributes {dimension_semantics = [#tpu.dimension_semantics<parallel>], iteration_bounds = array<i64: 2>, scalar_prefetch = 0 : i64, scratch_operands = 0 : i64, tpu.core_type = #tpu.core_type<tc>, window_params = [{transform_indices = @transform_0, window_bounds = array<i64: 104, 32>}, {transform_indices = @transform_1, window_bounds = array<i64: 104, 32>}, {transform_indices = @transform_2, window_bounds = array<i64: 104, 32>}, {transform_indices = @transform_3, window_bounds = array<i64: 104, 32>}, {transform_indices = @transform_4, window_bounds = array<i64: 104, 32>}, {pipeline_mode = #tpu.pipeline_mode<synchronous>, transform_indices = @transform_5, window_bounds = array<i64: 128, 512>}, {pipeline_mode = #tpu.pipeline_mode<synchronous>, transform_indices = @transform_6, window_bounds = array<i64: 1, 512>}, {transform_indices = @transform_7, window_bounds = array<i64: 104, 128>}]} {
    %c0 = arith.constant 0 : index
    %c0_0 = arith.constant 0 : index
    %0 = vector.load %arg1[%c0, %c0_0] : memref<104x32xf32, #tpu.memory_space<vmem>>, vector<104x32xf32>
    %c0_1 = arith.constant 0 : index
    %c0_2 = arith.constant 0 : index
    %1 = vector.load %arg2[%c0_1, %c0_2] : memref<104x32xf32, #tpu.memory_space<vmem>>, vector<104x32xf32>
    %c0_3 = arith.constant 0 : index
    %c0_4 = arith.constant 0 : index
    %2 = vector.load %arg3[%c0_3, %c0_4] : memref<104x32xf32, #tpu.memory_space<vmem>>, vector<104x32xf32>
    %cst = arith.constant 0.000000e+00 : f32
    %3 = vector.broadcast %cst : f32 to vector<104x32xf32>
    %4 = tpu.concatenate %0, %1, %2, %3 in 1 : vector<104x32xf32>, vector<104x32xf32>, vector<104x32xf32>, vector<104x32xf32> -> vector<104x128xf32>
    %5 = arith.truncf %4 : vector<104x128xf32> to vector<104x128xbf16>
    %c0_5 = arith.constant 0 : index
    %c0_6 = arith.constant 0 : index
    %6 = vector.load %arg6[%c0_5, %c0_6] : memref<128x512xbf16, #tpu.memory_space<vmem>>, vector<128x512xbf16>
    %cst_7 = arith.constant dense<0.000000e+00> : vector<104x512xf32>
    %7 = tpu.matmul %5, %6, %cst_7 {dimension_numbers = #tpu.dot_dimension_numbers<[1], [0], [0], [1], [0, 0, 1, 1], [], []>} : vector<104x128xbf16>, vector<128x512xbf16>, vector<104x512xf32> -> vector<104x512xf32>
    %c0_8 = arith.constant 0 : index
    %c0_9 = arith.constant 0 : index
    %8 = vector.load %arg7[%c0_8, %c0_9] : memref<1x512xf32, #tpu.memory_space<vmem>>, vector<1x512xf32>
    %9 = vector.broadcast %8 : vector<1x512xf32> to vector<104x512xf32>
    %10 = arith.addf %7, %9 : vector<104x512xf32>
    %11 = vector.extract_strided_slice %10 {offsets = [0, 0], sizes = [104, 160], strides = [1, 1]} : vector<104x512xf32> to vector<104x160xf32>
    %cst_10 = arith.constant dense<0.000000e+00> : vector<104xf32>
    %12 = vector.multi_reduction <add>, %11, %cst_10 [1] : vector<104x160xf32> to vector<104xf32>
    %13 = vector.shape_cast %12 : vector<104xf32> to vector<104x1xf32>
    %cst_11 = arith.constant 1.600000e+02 : f32
    %14 = vector.broadcast %cst_11 : f32 to vector<104x1xf32>
    %15 = arith.divf %13, %14 : vector<104x1xf32>
    %16 = vector.broadcast %15 : vector<104x1xf32> to vector<104x160xf32>
    %17 = arith.subf %11, %16 : vector<104x160xf32>
    %18 = arith.mulf %17, %17 : vector<104x160xf32>
    %cst_12 = arith.constant dense<0.000000e+00> : vector<104xf32>
    %19 = vector.multi_reduction <add>, %18, %cst_12 [1] : vector<104x160xf32> to vector<104xf32>
    %20 = vector.shape_cast %19 : vector<104xf32> to vector<104x1xf32>
    %cst_13 = arith.constant 1.600000e+02 : f32
    %21 = vector.broadcast %cst_13 : f32 to vector<104x1xf32>
    %22 = arith.divf %20, %21 : vector<104x1xf32>
    %cst_14 = arith.constant 9.99999974E-6 : f32
    %23 = vector.broadcast %cst_14 : f32 to vector<104x1xf32>
    %24 = arith.addf %22, %23 : vector<104x1xf32>
    %25 = math.rsqrt %24 : vector<104x1xf32>
    %26 = vector.broadcast %25 : vector<104x1xf32> to vector<104x160xf32>
    %27 = arith.mulf %17, %26 : vector<104x160xf32>
    %28 = vector.extract_strided_slice %10 {offsets = [0, 160], sizes = [104, 160], strides = [1, 1]} : vector<104x512xf32> to vector<104x160xf32>
    %cst_15 = arith.constant dense<0.000000e+00> : vector<104xf32>
    %29 = vector.multi_reduction <add>, %28, %cst_15 [1] : vector<104x160xf32> to vector<104xf32>
    %30 = vector.shape_cast %29 : vector<104xf32> to vector<104x1xf32>
    %cst_16 = arith.constant 1.600000e+02 : f32
    %31 = vector.broadcast %cst_16 : f32 to vector<104x1xf32>
    %32 = arith.divf %30, %31 : vector<104x1xf32>
    %33 = vector.broadcast %32 : vector<104x1xf32> to vector<104x160xf32>
    %34 = arith.subf %28, %33 : vector<104x160xf32>
    %35 = arith.mulf %34, %34 : vector<104x160xf32>
    %cst_17 = arith.constant dense<0.000000e+00> : vector<104xf32>
    %36 = vector.multi_reduction <add>, %35, %cst_17 [1] : vector<104x160xf32> to vector<104xf32>
    %37 = vector.shape_cast %36 : vector<104xf32> to vector<104x1xf32>
    %cst_18 = arith.constant 1.600000e+02 : f32
    %38 = vector.broadcast %cst_18 : f32 to vector<104x1xf32>
    %39 = arith.divf %37, %38 : vector<104x1xf32>
    %cst_19 = arith.constant 9.99999974E-6 : f32
    %40 = vector.broadcast %cst_19 : f32 to vector<104x1xf32>
    %41 = arith.addf %39, %40 : vector<104x1xf32>
    %42 = math.rsqrt %41 : vector<104x1xf32>
    %43 = vector.broadcast %42 : vector<104x1xf32> to vector<104x160xf32>
    %44 = arith.mulf %34, %43 : vector<104x160xf32>
    %45 = arith.addf %27, %44 : vector<104x160xf32>
    %46 = vector.extract_strided_slice %10 {offsets = [0, 320], sizes = [104, 160], strides = [1, 1]} : vector<104x512xf32> to vector<104x160xf32>
    %cst_20 = arith.constant dense<0.000000e+00> : vector<104xf32>
    %47 = vector.multi_reduction <add>, %46, %cst_20 [1] : vector<104x160xf32> to vector<104xf32>
    %48 = vector.shape_cast %47 : vector<104xf32> to vector<104x1xf32>
    %cst_21 = arith.constant 1.600000e+02 : f32
    %49 = vector.broadcast %cst_21 : f32 to vector<104x1xf32>
    %50 = arith.divf %48, %49 : vector<104x1xf32>
    %51 = vector.broadcast %50 : vector<104x1xf32> to vector<104x160xf32>
    %52 = arith.subf %46, %51 : vector<104x160xf32>
    %53 = arith.mulf %52, %52 : vector<104x160xf32>
    %cst_22 = arith.constant dense<0.000000e+00> : vector<104xf32>
    %54 = vector.multi_reduction <add>, %53, %cst_22 [1] : vector<104x160xf32> to vector<104xf32>
    %55 = vector.shape_cast %54 : vector<104xf32> to vector<104x1xf32>
    %cst_23 = arith.constant 1.600000e+02 : f32
    %56 = vector.broadcast %cst_23 : f32 to vector<104x1xf32>
    %57 = arith.divf %55, %56 : vector<104x1xf32>
    %cst_24 = arith.constant 9.99999974E-6 : f32
    %58 = vector.broadcast %cst_24 : f32 to vector<104x1xf32>
    %59 = arith.addf %57, %58 : vector<104x1xf32>
    %60 = math.rsqrt %59 : vector<104x1xf32>
    %61 = vector.broadcast %60 : vector<104x1xf32> to vector<104x160xf32>
    %62 = arith.mulf %52, %61 : vector<104x160xf32>
    %63 = arith.addf %45, %62 : vector<104x160xf32>
    %64 = vector.extract_strided_slice %63 {offsets = [0, 0], sizes = [104, 32], strides = [1, 1]} : vector<104x160xf32> to vector<104x32xf32>
    %65 = vector.extract_strided_slice %63 {offsets = [0, 32], sizes = [104, 128], strides = [1, 1]} : vector<104x160xf32> to vector<104x128xf32>
    %66 = arith.negf %65 : vector<104x128xf32>
    %67 = math.exp %66 : vector<104x128xf32>
    %cst_25 = arith.constant 1.000000e+00 : f32
    %68 = vector.broadcast %cst_25 : f32 to vector<104x128xf32>
    %69 = arith.addf %68, %67 : vector<104x128xf32>
    %70 = arith.divf %68, %69 : vector<104x128xf32>
    %71 = vector.extract_strided_slice %70 {offsets = [0, 0], sizes = [104, 32], strides = [1, 1]} : vector<104x128xf32> to vector<104x32xf32>
    %72 = vector.extract_strided_slice %70 {offsets = [0, 32], sizes = [104, 32], strides = [1, 1]} : vector<104x128xf32> to vector<104x32xf32>
    %73 = vector.extract_strided_slice %70 {offsets = [0, 64], sizes = [104, 32], strides = [1, 1]} : vector<104x128xf32> to vector<104x32xf32>
    %74 = vector.extract_strided_slice %70 {offsets = [0, 96], sizes = [104, 32], strides = [1, 1]} : vector<104x128xf32> to vector<104x32xf32>
    %75 = math.tanh %64 : vector<104x32xf32>
    %76 = arith.mulf %75, %71 : vector<104x32xf32>
    %c0_26 = arith.constant 0 : index
    %c0_27 = arith.constant 0 : index
    %77 = vector.load %arg4[%c0_26, %c0_27] : memref<104x32xf32, #tpu.memory_space<vmem>>, vector<104x32xf32>
    %78 = arith.mulf %72, %77 : vector<104x32xf32>
    %79 = arith.addf %76, %78 : vector<104x32xf32>
    %c0_28 = arith.constant 0 : index
    %c0_29 = arith.constant 0 : index
    %80 = vector.load %arg5[%c0_28, %c0_29] : memref<104x32xf32, #tpu.memory_space<vmem>>, vector<104x32xf32>
    %81 = arith.mulf %73, %80 : vector<104x32xf32>
    %82 = arith.addf %79, %81 : vector<104x32xf32>
    %cst_30 = arith.constant dense<0.000000e+00> : vector<104xf32>
    %83 = vector.multi_reduction <add>, %82, %cst_30 [1] : vector<104x32xf32> to vector<104xf32>
    %84 = vector.shape_cast %83 : vector<104xf32> to vector<104x1xf32>
    %cst_31 = arith.constant 3.200000e+01 : f32
    %85 = vector.broadcast %cst_31 : f32 to vector<104x1xf32>
    %86 = arith.divf %84, %85 : vector<104x1xf32>
    %87 = vector.broadcast %86 : vector<104x1xf32> to vector<104x32xf32>
    %88 = arith.subf %82, %87 : vector<104x32xf32>
    %89 = arith.mulf %88, %88 : vector<104x32xf32>
    %cst_32 = arith.constant dense<0.000000e+00> : vector<104xf32>
    %90 = vector.multi_reduction <add>, %89, %cst_32 [1] : vector<104x32xf32> to vector<104xf32>
    %91 = vector.shape_cast %90 : vector<104xf32> to vector<104x1xf32>
    %cst_33 = arith.constant 3.200000e+01 : f32
    %92 = vector.broadcast %cst_33 : f32 to vector<104x1xf32>
    %93 = arith.divf %91, %92 : vector<104x1xf32>
    %cst_34 = arith.constant 9.99999974E-6 : f32
    %94 = vector.broadcast %cst_34 : f32 to vector<104x1xf32>
    %95 = arith.addf %93, %94 : vector<104x1xf32>
    %96 = math.rsqrt %95 : vector<104x1xf32>
    %97 = vector.broadcast %96 : vector<104x1xf32> to vector<104x32xf32>
    %98 = arith.mulf %88, %97 : vector<104x32xf32>
    %99 = math.tanh %98 : vector<104x32xf32>
    %100 = arith.mulf %74, %99 : vector<104x32xf32>
    %cst_35 = arith.constant 0.000000e+00 : f32
    %101 = vector.broadcast %cst_35 : f32 to vector<104x64xf32>
    %102 = tpu.concatenate %100, %98, %101 in 1 : vector<104x32xf32>, vector<104x32xf32>, vector<104x64xf32> -> vector<104x128xf32>
    %c0_36 = arith.constant 0 : index
    %c0_37 = arith.constant 0 : index
    %103 = vector.load %arg8[%c0_36, %c0_37] : memref<104x128xf32, #tpu.memory_space<vmem>>, vector<104x128xf32>
    tpu.vector_store %arg8[%c0_36, %c0_37], %102 {strides = array<i32>} : memref<104x128xf32, #tpu.memory_space<vmem>>, vector<104x128xf32>,
    return
  }
  func.func @transform_0(%arg0: i32) -> (i32, i32) {
    %c0_i32 = arith.constant 0 : i32
    %c0_i32_0 = arith.constant 0 : i32
    return %arg0, %c0_i32 : i32, i32
  }
  func.func @transform_1(%arg0: i32) -> (i32, i32) {
    %c0_i32 = arith.constant 0 : i32
    %c0_i32_0 = arith.constant 0 : i32
    return %arg0, %c0_i32 : i32, i32
  }
  func.func @transform_2(%arg0: i32) -> (i32, i32) {
    %c0_i32 = arith.constant 0 : i32
    %c0_i32_0 = arith.constant 0 : i32
    return %arg0, %c0_i32 : i32, i32
  }
  func.func @transform_3(%arg0: i32) -> (i32, i32) {
    %c0_i32 = arith.constant 0 : i32
    %c0_i32_0 = arith.constant 0 : i32
    return %arg0, %c0_i32 : i32, i32
  }
  func.func @transform_4(%arg0: i32) -> (i32, i32) {
    %c0_i32 = arith.constant 0 : i32
    %c0_i32_0 = arith.constant 0 : i32
    return %arg0, %c0_i32 : i32, i32
  }
  func.func @transform_5(%arg0: i32) -> (i32, i32) {
    %c0_i32 = arith.constant 0 : i32
    %c0_i32_0 = arith.constant 0 : i32
    %c0_i32_1 = arith.constant 0 : i32
    return %c0_i32, %c0_i32_0 : i32, i32
  }
  func.func @transform_6(%arg0: i32) -> (i32, i32) {
    %c0_i32 = arith.constant 0 : i32
    %c0_i32_0 = arith.constant 0 : i32
    %c0_i32_1 = arith.constant 0 : i32
    return %c0_i32, %c0_i32_0 : i32, i32
  }
  func.func @transform_7(%arg0: i32) -> (i32, i32) {
    %c0_i32 = arith.constant 0 : i32
    %c0_i32_0 = arith.constant 0 : i32
    return %arg0, %c0_i32 : i32, i32
  }
}

</mosaic_0001>

<llo_original>
// kernel: tpu_custom_call.1
$region0: #{tpu_custom_call.1}
  #allocation0 [shape = 'u32[]', space=smem, size = 0x4, offset = 0x4, fixed_abs, tag = 'smem constant byte address 0x4 - core index']
  #allocation1 [shape = 'u32[144,128]{1,0:T(1,128)}', space=vmem, size = 0x12000, scoped, tag = 'internal scratch']
  %s0 = inlined_call_operand.vmem [shape: f32[200,32], index: 0, kind: input, shape index: {}]
  %s1 = inlined_call_operand.vmem [shape: f32[200,32], index: 1, kind: input, shape index: {}]
  %s2 = inlined_call_operand.vmem [shape: f32[200,32], index: 2, kind: input, shape index: {}]
  %s3 = inlined_call_operand.vmem [shape: f32[200,32], index: 3, kind: input, shape index: {}]
  %s4 = inlined_call_operand.vmem [shape: f32[200,32], index: 4, kind: input, shape index: {}]
  %s5 = inlined_call_operand.vmem [shape: bf16[128,512], index: 5, kind: input, shape index: {}]
  %s6 = inlined_call_operand.vmem [shape: f32[1,512], index: 6, kind: input, shape index: {}]
  %s7 = inlined_call_operand.hbm [shape: f32[200,128], index: 7, kind: output, shape index: {}]
  %s8 = sld [smem:[#allocation0]]
  $region61: #{tpu_custom_call.1} parent=0
    _
  %s10 = ssub.s32 1, %s8
  %s11 = scalar_select 0, %s10, %s8
  $region1: #{tpu_custom_call.1} parent=0
    #allocation2 [shape = 'u8[106496]{0}', space=vmem, size = 0x1a000, scoped, tag = 'output window, operand 0']
    #allocation3 [shape = 's32[2]{0}', space=sflag, size = 0x8, scoped, tag = 'scoped memory for tpu_custom_call.1']
    %12 = vsyncpa [#allocation3], 0
    %s13 = scalar_lea.sflag [#allocation3], 1
    %14 = vsyncpa %s13, 0
    loop: start=0, step=1, limit=4
    $region2: #{tpu_custom_call.1} parent=1 // loop_pre_header
      _
    $region3: #{tpu_custom_call.1} parent=1 // loop_header
      %s16 = sphi 0, %s20
      %p17 = scmp.ge.s32.totalorder %s16, 4
      %s26 = sphi 0, %s28
      %s29 = sphi 0, %s26
      %s30 = sphi 0, %s29
      %s46 = sphi 0, %s30
      %s52 = sphi 0, %s54
      %s55 = sphi 0, %s52
      %s56 = sphi 0, %s55
      %s72 = sphi 0, %s56
      %s78 = sphi 0, %s80
      %s81 = sphi 0, %s78
      %s82 = sphi 0, %s81
      %s98 = sphi 0, %s82
      %s104 = sphi 0, %s106
      %s107 = sphi 0, %s104
      %s108 = sphi 0, %s107
      %s124 = sphi 0, %s108
      %s130 = sphi 0, %s132
      %s133 = sphi 0, %s130
      %s134 = sphi 0, %s133
      %s150 = sphi 0, %s134
      %s154 = sphi 0, %s154
      %s156 = sphi 0, %s154
      %s157 = sphi 0, %s156
      %s171 = sphi 0, %s157
      %s175 = sphi 0, %s175
      %s177 = sphi 0, %s175
      %s178 = sphi 0, %s177
      %s192 = sphi 0, %s178
      %s198 = sphi 0, %s200
      %s201 = sphi 0, %s198
      %s202 = sphi 0, %s201
      %s218 = sphi 0, %s202
    $region4: #{tpu_custom_call.1} parent=1 // loop_header_branch
      %19 = sbr.rel (%p17) target = $region8
    $region5: #{tpu_custom_call.1} parent=1 // loop_body
      %s21 = ssub.s32 %s16, 1
      %s22 = ssub.s32 %s16, 2
      %s23 = sadd.s32 %s16, 1
      %s24 = ssub.s32 %s16, %s23
      %p25 = scmp.eq.s32.totalorder %s24, 0
      %s27 = sadd.s32 %s26, 1
      %s28 = scalar_select %p25, %s26, %s27
      %p31 = pneg %p25
      %p32 = scmp.eq.s32.totalorder %s16, 1
      %p33 = por %p31, %p32
      %p34 = scmp.ne.s32.totalorder %s26, %s29
      %p35 = scmp.eq.s32.totalorder %s16, 0
      %p36 = por %p34, %p35
      %p37 = scmp.ne.s32.totalorder %s26, %s29
      %p38 = scmp.eq.s32.totalorder %s21, 1
      %p39 = por %p37, %p38
      %p40 = scmp.ne.s32.totalorder %s29, %s30
      %p41 = scmp.eq.s32.totalorder %s21, 0
      %p42 = por %p40, %p41
      %p43 = scmp.ne.s32.totalorder %s29, %s30
      %p44 = scmp.eq.s32.totalorder %s22, 1
      %p45 = por %p43, %p44
      %p47 = scmp.ne.s32.totalorder %s30, %s46
      %p48 = scmp.eq.s32.totalorder %s22, 0
      %p49 = por %p47, %p48
      %s50 = ssub.s32 %s16, %s23
      %p51 = scmp.eq.s32.totalorder %s50, 0
      %s53 = sadd.s32 %s52, 1
      %s54 = scalar_select %p51, %s52, %s53
      %p57 = pneg %p51
      %p58 = scmp.eq.s32.totalorder %s16, 1
      %p59 = por %p57, %p58
      %p60 = scmp.ne.s32.totalorder %s52, %s55
      %p61 = scmp.eq.s32.totalorder %s16, 0
      %p62 = por %p60, %p61
      %p63 = scmp.ne.s32.totalorder %s52, %s55
      %p64 = scmp.eq.s32.totalorder %s21, 1
      %p65 = por %p63, %p64
      %p66 = scmp.ne.s32.totalorder %s55, %s56
      %p67 = scmp.eq.s32.totalorder %s21, 0
      %p68 = por %p66, %p67
      %p69 = scmp.ne.s32.totalorder %s55, %s56
      %p70 = scmp.eq.s32.totalorder %s22, 1
      %p71 = por %p69, %p70
      %p73 = scmp.ne.s32.totalorder %s56, %s72
      %p74 = scmp.eq.s32.totalorder %s22, 0
      %p75 = por %p73, %p74
      %s76 = ssub.s32 %s16, %s23
      %p77 = scmp.eq.s32.totalorder %s76, 0
      %s79 = sadd.s32 %s78, 1
      %s80 = scalar_select %p77, %s78, %s79
      %p83 = pneg %p77
      %p84 = scmp.eq.s32.totalorder %s16, 1
      %p85 = por %p83, %p84
      %p86 = scmp.ne.s32.totalorder %s78, %s81
      %p87 = scmp.eq.s32.totalorder %s16, 0
      %p88 = por %p86, %p87
      %p89 = scmp.ne.s32.totalorder %s78, %s81
      %p90 = scmp.eq.s32.totalorder %s21, 1
      %p91 = por %p89, %p90
      %p92 = scmp.ne.s32.totalorder %s81, %s82
      %p93 = scmp.eq.s32.totalorder %s21, 0
      %p94 = por %p92, %p93
      %p95 = scmp.ne.s32.totalorder %s81, %s82
      %p96 = scmp.eq.s32.totalorder %s22, 1
      %p97 = por %p95, %p96
      %p99 = scmp.ne.s32.totalorder %s82, %s98
      %p100 = scmp.eq.s32.totalorder %s22, 0
      %p101 = por %p99, %p100
      %s102 = ssub.s32 %s16, %s23
      %p103 = scmp.eq.s32.totalorder %s102, 0
      %s105 = sadd.s32 %s104, 1
      %s106 = scalar_select %p103, %s104, %s105
      %p109 = pneg %p103
      %p110 = scmp.eq.s32.totalorder %s16, 1
      %p111 = por %p109, %p110
      %p112 = scmp.ne.s32.totalorder %s104, %s107
      %p113 = scmp.eq.s32.totalorder %s16, 0
      %p114 = por %p112, %p113
      %p115 = scmp.ne.s32.totalorder %s104, %s107
      %p116 = scmp.eq.s32.totalorder %s21, 1
      %p117 = por %p115, %p116
      %p118 = scmp.ne.s32.totalorder %s107, %s108
      %p119 = scmp.eq.s32.totalorder %s21, 0
      %p120 = por %p118, %p119
      %p121 = scmp.ne.s32.totalorder %s107, %s108
      %p122 = scmp.eq.s32.totalorder %s22, 1
      %p123 = por %p121, %p122
      %p125 = scmp.ne.s32.totalorder %s108, %s124
      %p126 = scmp.eq.s32.totalorder %s22, 0
      %p127 = por %p125, %p126
      %s128 = ssub.s32 %s16, %s23
      %p129 = scmp.eq.s32.totalorder %s128, 0
      %s131 = sadd.s32 %s130, 1
      %s132 = scalar_select %p129, %s130, %s131
      %p135 = pneg %p129
      %p136 = scmp.eq.s32.totalorder %s16, 1
      %p137 = por %p135, %p136
      %p138 = scmp.ne.s32.totalorder %s130, %s133
      %p139 = scmp.eq.s32.totalorder %s16, 0
      %p140 = por %p138, %p139
      %p141 = scmp.ne.s32.totalorder %s130, %s133
      %p142 = scmp.eq.s32.totalorder %s21, 1
      %p143 = por %p141, %p142
      %p144 = scmp.ne.s32.totalorder %s133, %s134
      %p145 = scmp.eq.s32.totalorder %s21, 0
      %p146 = por %p144, %p145
      %p147 = scmp.ne.s32.totalorder %s133, %s134
      %p148 = scmp.eq.s32.totalorder %s22, 1
      %p149 = por %p147, %p148
      %p151 = scmp.ne.s32.totalorder %s134, %s150
      %p152 = scmp.eq.s32.totalorder %s22, 0
      %p153 = por %p151, %p152
      %s155 = sadd.s32 %s154, 1
      %p158 = scmp.eq.s32.totalorder %s16, 1
      %p159 = scmp.ne.s32.totalorder %s154, %s156
      %p160 = scmp.eq.s32.totalorder %s16, 0
      %p161 = por %p159, %p160
      %p162 = scmp.ne.s32.totalorder %s154, %s156
      %p163 = scmp.eq.s32.totalorder %s21, 1
      %p164 = por %p162, %p163
      %p165 = scmp.ne.s32.totalorder %s156, %s157
      %p166 = scmp.eq.s32.totalorder %s21, 0
      %p167 = por %p165, %p166
      %p168 = scmp.ne.s32.totalorder %s156, %s157
      %p169 = scmp.eq.s32.totalorder %s22, 1
      %p170 = por %p168, %p169
      %p172 = scmp.ne.s32.totalorder %s157, %s171
      %p173 = scmp.eq.s32.totalorder %s22, 0
      %p174 = por %p172, %p173
      %s176 = sadd.s32 %s175, 1
      %p179 = scmp.eq.s32.totalorder %s16, 1
      %p180 = scmp.ne.s32.totalorder %s175, %s177
      %p181 = scmp.eq.s32.totalorder %s16, 0
      %p182 = por %p180, %p181
      %p183 = scmp.ne.s32.totalorder %s175, %s177
      %p184 = scmp.eq.s32.totalorder %s21, 1
      %p185 = por %p183, %p184
      %p186 = scmp.ne.s32.totalorder %s177, %s178
      %p187 = scmp.eq.s32.totalorder %s21, 0
      %p188 = por %p186, %p187
      %p189 = scmp.ne.s32.totalorder %s177, %s178
      %p190 = scmp.eq.s32.totalorder %s22, 1
      %p191 = por %p189, %p190
      %p193 = scmp.ne.s32.totalorder %s178, %s192
      %p194 = scmp.eq.s32.totalorder %s22, 0
      %p195 = por %p193, %p194
      %s196 = ssub.s32 %s16, %s23
      %p197 = scmp.eq.s32.totalorder %s196, 0
      %s199 = sadd.s32 %s198, 1
      %s200 = scalar_select %p197, %s198, %s199
      %p203 = pneg %p197
      %p204 = scmp.eq.s32.totalorder %s16, 1
      %p205 = por %p203, %p204
      %p206 = scmp.ne.s32.totalorder %s198, %s201
      %p207 = scmp.eq.s32.totalorder %s16, 0
      %p208 = por %p206, %p207
      %p209 = scmp.ne.s32.totalorder %s198, %s201
      %p210 = scmp.eq.s32.totalorder %s21, 1
      %p211 = por %p209, %p210
      %p212 = scmp.ne.s32.totalorder %s201, %s202
      %p213 = scmp.eq.s32.totalorder %s21, 0
      %p214 = por %p212, %p213
      %p215 = scmp.ne.s32.totalorder %s201, %s202
      %p216 = scmp.eq.s32.totalorder %s22, 1
      %p217 = por %p215, %p216
      %p219 = scmp.ne.s32.totalorder %s202, %s218
      %p220 = scmp.eq.s32.totalorder %s22, 0
      %p221 = por %p219, %p220
      %p222 = scmp.le.s32.totalorder 1, %s16
      %p223 = scmp.lt.s32.totalorder %s16, 3
      %p224 = pnand %p222, %p223
      %p225 = pneg %p224
      // Predicated region
      $region9: #{tpu_custom_call.1} parent=5 // pred_check
        _
      $region10: #{tpu_custom_call.1} parent=5 // pred_check_branch
        %227 = sbr.rel (%p224) target = $region12
      $region11: #{tpu_custom_call.1} parent=5 // pred_region
        %s228 = ssub.s32 %s16, 1
        // Predicated region
        $region13: #{tpu_custom_call.1} parent=11 // pred_check
          %p229 = pneg %p167
        $region14: #{tpu_custom_call.1} parent=11 // pred_check_branch
          %231 = sbr.rel (%p229) target = $region16
        $region15: #{tpu_custom_call.1} parent=11 // pred_region
          _
        $region16: #{tpu_custom_call.1} parent=11 // pred_fallthru
          _
        // Predicated region
        $region17: #{tpu_custom_call.1} parent=11 // pred_check
          %p232 = pneg %p188
        $region18: #{tpu_custom_call.1} parent=11 // pred_check_branch
          %234 = sbr.rel (%p232) target = $region20
        $region19: #{tpu_custom_call.1} parent=11 // pred_region
          _
        $region20: #{tpu_custom_call.1} parent=11 // pred_fallthru
          _
      $region12: #{tpu_custom_call.1} parent=5 // pred_fallthru
        _
      %p235 = scmp.lt.s32.totalorder %s16, 2
      // Predicated region
      $region21: #{tpu_custom_call.1} parent=5 // pred_check
        %p236 = pneg %p235
      $region22: #{tpu_custom_call.1} parent=5 // pred_check_branch
        %238 = sbr.rel (%p236) target = $region24
      $region23: #{tpu_custom_call.1} parent=5 // pred_region
        // Predicated region
        $region25: #{tpu_custom_call.1} parent=23 // pred_check
          %p239 = pneg %p36
        $region26: #{tpu_custom_call.1} parent=23 // pred_check_branch
          %241 = sbr.rel (%p239) target = $region28
        $region27: #{tpu_custom_call.1} parent=23 // pred_region
          %s242 = smul.u32 13, %s16
          %s243 = ssub.s32 25, %s242
          %p244 = scmp.lt.s32.totalorder %s243, 13
          %s245 = scalar_select %p244, %s243, 13
          %s246 = smul.u32 128, %s245
          %p247 = scmp.lt.s32.totalorder %s242, 24
          %s248 = scalar_select %p247, %s242, 24
          %s249 = smul.addr %s248, 8
          %s250 = scalar_lea.vmem %s0, %s249
          %s251 = smul.u32 13, %s16
          %s252 = ssub.s32 25, %s251
          %p253 = scmp.lt.s32.totalorder %s252, 13
          %s254 = scalar_select %p253, %s252, 13
          %s255 = smul.u32 128, %s254
        $region28: #{tpu_custom_call.1} parent=23 // pred_fallthru
          _
        // Predicated region
        $region29: #{tpu_custom_call.1} parent=23 // pred_check
          %p256 = pneg %p62
        $region30: #{tpu_custom_call.1} parent=23 // pred_check_branch
          %258 = sbr.rel (%p256) target = $region32
        $region31: #{tpu_custom_call.1} parent=23 // pred_region
          %s259 = smul.u32 13, %s16
          %s260 = ssub.s32 25, %s259
          %p261 = scmp.lt.s32.totalorder %s260, 13
          %s262 = scalar_select %p261, %s260, 13
          %s263 = smul.u32 128, %s262
          %p264 = scmp.lt.s32.totalorder %s259, 24
          %s265 = scalar_select %p264, %s259, 24
          %s266 = smul.addr %s265, 8
          %s267 = scalar_lea.vmem %s1, %s266
          %s268 = smul.u32 13, %s16
          %s269 = ssub.s32 25, %s268
          %p270 = scmp.lt.s32.totalorder %s269, 13
          %s271 = scalar_select %p270, %s269, 13
          %s272 = smul.u32 128, %s271
        $region32: #{tpu_custom_call.1} parent=23 // pred_fallthru
          _
        // Predicated region
        $region33: #{tpu_custom_call.1} parent=23 // pred_check
          %p273 = pneg %p88
        $region34: #{tpu_custom_call.1} parent=23 // pred_check_branch
          %275 = sbr.rel (%p273) target = $region36
        $region35: #{tpu_custom_call.1} parent=23 // pred_region
          %s276 = smul.u32 13, %s16
          %s277 = ssub.s32 25, %s276
          %p278 = scmp.lt.s32.totalorder %s277, 13
          %s279 = scalar_select %p278, %s277, 13
          %s280 = smul.u32 128, %s279
          %p281 = scmp.lt.s32.totalorder %s276, 24
          %s282 = scalar_select %p281, %s276, 24
          %s283 = smul.addr %s282, 8
          %s284 = scalar_lea.vmem %s2, %s283
          %s285 = smul.u32 13, %s16
          %s286 = ssub.s32 25, %s285
          %p287 = scmp.lt.s32.totalorder %s286, 13
          %s288 = scalar_select %p287, %s286, 13
          %s289 = smul.u32 128, %s288
        $region36: #{tpu_custom_call.1} parent=23 // pred_fallthru
          _
        // Predicated region
        $region37: #{tpu_custom_call.1} parent=23 // pred_check
          %p290 = pneg %p114
        $region38: #{tpu_custom_call.1} parent=23 // pred_check_branch
          %292 = sbr.rel (%p290) target = $region40
        $region39: #{tpu_custom_call.1} parent=23 // pred_region
          %s293 = smul.u32 13, %s16
          %s294 = ssub.s32 25, %s293
          %p295 = scmp.lt.s32.totalorder %s294, 13
          %s296 = scalar_select %p295, %s294, 13
          %s297 = smul.u32 128, %s296
          %p298 = scmp.lt.s32.totalorder %s293, 24
          %s299 = scalar_select %p298, %s293, 24
          %s300 = smul.addr %s299, 8
          %s301 = scalar_lea.vmem %s3, %s300
          %s302 = smul.u32 13, %s16
          %s303 = ssub.s32 25, %s302
          %p304 = scmp.lt.s32.totalorder %s303, 13
          %s305 = scalar_select %p304, %s303, 13
          %s306 = smul.u32 128, %s305
        $region40: #{tpu_custom_call.1} parent=23 // pred_fallthru
          _
        // Predicated region
        $region41: #{tpu_custom_call.1} parent=23 // pred_check
          %p307 = pneg %p140
        $region42: #{tpu_custom_call.1} parent=23 // pred_check_branch
          %309 = sbr.rel (%p307) target = $region44
        $region43: #{tpu_custom_call.1} parent=23 // pred_region
          %s310 = smul.u32 13, %s16
          %s311 = ssub.s32 25, %s310
          %p312 = scmp.lt.s32.totalorder %s311, 13
          %s313 = scalar_select %p312, %s311, 13
          %s314 = smul.u32 128, %s313
          %p315 = scmp.lt.s32.totalorder %s310, 24
          %s316 = scalar_select %p315, %s310, 24
          %s317 = smul.addr %s316, 8
          %s318 = scalar_lea.vmem %s4, %s317
          %s319 = smul.u32 13, %s16
          %s320 = ssub.s32 25, %s319
          %p321 = scmp.lt.s32.totalorder %s320, 13
          %s322 = scalar_select %p321, %s320, 13
          %s323 = smul.u32 128, %s322
        $region44: #{tpu_custom_call.1} parent=23 // pred_fallthru
          _
      $region24: #{tpu_custom_call.1} parent=5 // pred_fallthru
        _
      %p324 = scmp.le.s32.totalorder 1, %s16
      %p325 = scmp.lt.s32.totalorder %s16, 3
      %p326 = pnand %p324, %p325
      %p327 = pneg %p326
      // Predicated region
      $region45: #{tpu_custom_call.1} parent=5 // pred_check
        _
      $region46: #{tpu_custom_call.1} parent=5 // pred_check_branch
        %329 = sbr.rel (%p326) target = $region48
      $region47: #{tpu_custom_call.1} parent=5 // pred_region
        %s330 = ssub.s32 %s16, 1
        %s331 = smul.u32 13, %s21
        %s332 = ssub.s32 25, %s331
        %p333 = scmp.lt.s32.totalorder %s332, 13
        %s334 = scalar_select %p333, %s332, 13
        %s335 = smul.u32 128, %s334
        %p336 = scmp.lt.s32.totalorder %s331, 24
        %s337 = scalar_select %p336, %s331, 24
        %s338 = smul.addr %s337, 8
        %s339 = scalar_lea.vmem %s0, %s338
        %p340 = pneg %p42
        %p341 = pneg %p39
        %s342 = smul.u32 13, %s21
        %s343 = ssub.s32 25, %s342
        %p344 = scmp.lt.s32.totalorder %s343, 13
        %s345 = scalar_select %p344, %s343, 13
        %s346 = smul.u32 128, %s345
        %p347 = scmp.lt.s32.totalorder %s342, 24
        %s348 = scalar_select %p347, %s342, 24
        %s349 = smul.addr %s348, 8
        %s350 = scalar_lea.vmem %s1, %s349
        %p351 = pneg %p68
        %p352 = pneg %p65
        %s353 = smul.u32 13, %s21
        %s354 = ssub.s32 25, %s353
        %p355 = scmp.lt.s32.totalorder %s354, 13
        %s356 = scalar_select %p355, %s354, 13
        %s357 = smul.u32 128, %s356
        %p358 = scmp.lt.s32.totalorder %s353, 24
        %s359 = scalar_select %p358, %s353, 24
        %s360 = smul.addr %s359, 8
        %s361 = scalar_lea.vmem %s2, %s360
        %p362 = pneg %p94
        %p363 = pneg %p91
        %s364 = smul.u32 13, %s21
        %s365 = ssub.s32 25, %s364
        %p366 = scmp.lt.s32.totalorder %s365, 13
        %s367 = scalar_select %p366, %s365, 13
        %s368 = smul.u32 128, %s367
        %p369 = scmp.lt.s32.totalorder %s364, 24
        %s370 = scalar_select %p369, %s364, 24
        %s371 = smul.addr %s370, 8
        %s372 = scalar_lea.vmem %s3, %s371
        %p373 = pneg %p120
        %p374 = pneg %p117
        %s375 = smul.u32 13, %s21
        %s376 = ssub.s32 25, %s375
        %p377 = scmp.lt.s32.totalorder %s376, 13
        %s378 = scalar_select %p377, %s376, 13
        %s379 = smul.u32 128, %s378
        %p380 = scmp.lt.s32.totalorder %s375, 24
        %s381 = scalar_select %p380, %s375, 24
        %s382 = smul.addr %s381, 8
        %s383 = scalar_lea.vmem %s4, %s382
        %p384 = pneg %p146
        %p385 = pneg %p143
        %p386 = pneg %p167
        %p387 = pneg %p164
        %p388 = pneg %p188
        %p389 = pneg %p185
        %p390 = pneg %p214
        %p391 = pneg %p211
        %s392 = sand.u32 %s201, 1
        %s393 = scalar_lea.sflag [#allocation3], %s392
        %s394 = sand.u32 %s201, 1
        %s395 = smul.addr %s394, 104
        %s396 = scalar_lea.vmem [#allocation2], %s395
        %s397 = smul.u32 13, %s21
        %s398 = ssub.s32 25, %s397
        %p399 = scmp.lt.s32.totalorder %s398, 13
        %s400 = scalar_select %p399, %s398, 13
        %s401 = smul.u32 128, %s400
        %p402 = scmp.lt.s32.totalorder %s397, 24
        %s403 = scalar_select %p402, %s397, 24
        %s404 = smul.addr %s403, 8
        %s405 = scalar_lea.vmem %s0, %s404
        %s406 = smul.u32 13, %s21
        %s407 = ssub.s32 25, %s406
        %p408 = scmp.lt.s32.totalorder %s407, 13
        %s409 = scalar_select %p408, %s407, 13
        %s410 = smul.u32 128, %s409
        %s411 = smul.u32 13, %s21
        %s412 = ssub.s32 25, %s411
        %p413 = scmp.lt.s32.totalorder %s412, 13
        %s414 = scalar_select %p413, %s412, 13
        %s415 = smul.u32 128, %s414
        %p416 = scmp.lt.s32.totalorder %s411, 24
        %s417 = scalar_select %p416, %s411, 24
        %s418 = smul.addr %s417, 8
        %s419 = scalar_lea.vmem %s1, %s418
        %s420 = smul.u32 13, %s21
        %s421 = ssub.s32 25, %s420
        %p422 = scmp.lt.s32.totalorder %s421, 13
        %s423 = scalar_select %p422, %s421, 13
        %s424 = smul.u32 128, %s423
        %s425 = smul.u32 13, %s21
        %s426 = ssub.s32 25, %s425
        %p427 = scmp.lt.s32.totalorder %s426, 13
        %s428 = scalar_select %p427, %s426, 13
        %s429 = smul.u32 128, %s428
        %p430 = scmp.lt.s32.totalorder %s425, 24
        %s431 = scalar_select %p430, %s425, 24
        %s432 = smul.addr %s431, 8
        %s433 = scalar_lea.vmem %s2, %s432
        %s434 = smul.u32 13, %s21
        %s435 = ssub.s32 25, %s434
        %p436 = scmp.lt.s32.totalorder %s435, 13
        %s437 = scalar_select %p436, %s435, 13
        %s438 = smul.u32 128, %s437
        %s439 = smul.u32 13, %s21
        %s440 = ssub.s32 25, %s439
        %p441 = scmp.lt.s32.totalorder %s440, 13
        %s442 = scalar_select %p441, %s440, 13
        %s443 = smul.u32 128, %s442
        %p444 = scmp.lt.s32.totalorder %s439, 24
        %s445 = scalar_select %p444, %s439, 24
        %s446 = smul.addr %s445, 8
        %s447 = scalar_lea.vmem %s3, %s446
        %s448 = smul.u32 13, %s21
        %s449 = ssub.s32 25, %s448
        %p450 = scmp.lt.s32.totalorder %s449, 13
        %s451 = scalar_select %p450, %s449, 13
        %s452 = smul.u32 128, %s451
        %s453 = smul.u32 13, %s21
        %s454 = ssub.s32 25, %s453
        %p455 = scmp.lt.s32.totalorder %s454, 13
        %s456 = scalar_select %p455, %s454, 13
        %s457 = smul.u32 128, %s456
        %p458 = scmp.lt.s32.totalorder %s453, 24
        %s459 = scalar_select %p458, %s453, 24
        %s460 = smul.addr %s459, 8
        %s461 = scalar_lea.vmem %s4, %s460
        %s462 = smul.u32 13, %s21
        %s463 = ssub.s32 25, %s462
        %p464 = scmp.lt.s32.totalorder %s463, 13
        %s465 = scalar_select %p464, %s463, 13
        %s466 = smul.u32 128, %s465
        %s467 = smul.u32 13, %s21
        %s468 = ssub.s32 25, %s467
        %p469 = scmp.lt.s32.totalorder %s468, 13
        %s470 = scalar_select %p469, %s468, 13
        %s471 = smul.u32 128, %s470
        %v473 = vld [vmem:[%s405] sm:$0xff]
        %v474 = vld [vmem:[%s405 + $0x8] sm:$0xff]
        %v475 = vld [vmem:[%s405 + $0x10] sm:$0xff]
        %v476 = vld [vmem:[%s405 + $0x18] sm:$0xff]
        %v477 = vld [vmem:[%s405 + $0x20] sm:$0xff]
        %v478 = vld [vmem:[%s405 + $0x28] sm:$0xff]
        %v479 = vld [vmem:[%s405 + $0x30] sm:$0xff]
        %v480 = vld [vmem:[%s405 + $0x38] sm:$0xff]
        %v481 = vld [vmem:[%s405 + $0x40] sm:$0xff]
        %v482 = vld [vmem:[%s405 + $0x48] sm:$0xff]
        %v483 = vld [vmem:[%s405 + $0x50] sm:$0xff]
        %v484 = vld [vmem:[%s405 + $0x58] sm:$0xff]
        %v485 = vld [vmem:[%s405 + $0x60] sm:$0xff]
        %v486 = vld [vmem:[%s419] sm:$0xff]
        %v487 = vld [vmem:[%s419 + $0x8] sm:$0xff]
        %v488 = vld [vmem:[%s419 + $0x10] sm:$0xff]
        %v489 = vld [vmem:[%s419 + $0x18] sm:$0xff]
        %v490 = vld [vmem:[%s419 + $0x20] sm:$0xff]
        %v491 = vld [vmem:[%s419 + $0x28] sm:$0xff]
        %v492 = vld [vmem:[%s419 + $0x30] sm:$0xff]
        %v493 = vld [vmem:[%s419 + $0x38] sm:$0xff]
        %v494 = vld [vmem:[%s419 + $0x40] sm:$0xff]
        %v495 = vld [vmem:[%s419 + $0x48] sm:$0xff]
        %v496 = vld [vmem:[%s419 + $0x50] sm:$0xff]
        %v497 = vld [vmem:[%s419 + $0x58] sm:$0xff]
        %v498 = vld [vmem:[%s419 + $0x60] sm:$0xff]
        %v499 = vld [vmem:[%s433] sm:$0xff]
        %v500 = vld [vmem:[%s433 + $0x8] sm:$0xff]
        %v501 = vld [vmem:[%s433 + $0x10] sm:$0xff]
        %v502 = vld [vmem:[%s433 + $0x18] sm:$0xff]
        %v503 = vld [vmem:[%s433 + $0x20] sm:$0xff]
        %v504 = vld [vmem:[%s433 + $0x28] sm:$0xff]
        %v505 = vld [vmem:[%s433 + $0x30] sm:$0xff]
        %v506 = vld [vmem:[%s433 + $0x38] sm:$0xff]
        %v507 = vld [vmem:[%s433 + $0x40] sm:$0xff]
        %v508 = vld [vmem:[%s433 + $0x48] sm:$0xff]
        %v509 = vld [vmem:[%s433 + $0x50] sm:$0xff]
        %v510 = vld [vmem:[%s433 + $0x58] sm:$0xff]
        %v511 = vld [vmem:[%s433 + $0x60] sm:$0xff]
        %525 = vrot.lane.b32.xlu0 %v486, 32
        %v526 = vpop.permute.xlu0 %525
        %527 = vrot.lane.b32.xlu0 %v487, 32
        %v528 = vpop.permute.xlu0 %527
        %529 = vrot.lane.b32.xlu0 %v488, 32
        %v530 = vpop.permute.xlu0 %529
        %531 = vrot.lane.b32.xlu0 %v489, 32
        %v532 = vpop.permute.xlu0 %531
        %533 = vrot.lane.b32.xlu0 %v490, 32
        %v534 = vpop.permute.xlu0 %533
        %535 = vrot.lane.b32.xlu0 %v491, 32
        %v536 = vpop.permute.xlu0 %535
        %537 = vrot.lane.b32.xlu0 %v492, 32
        %v538 = vpop.permute.xlu0 %537
        %539 = vrot.lane.b32.xlu0 %v493, 32
        %v540 = vpop.permute.xlu0 %539
        %541 = vrot.lane.b32.xlu0 %v494, 32
        %v542 = vpop.permute.xlu0 %541
        %543 = vrot.lane.b32.xlu0 %v495, 32
        %v544 = vpop.permute.xlu0 %543
        %545 = vrot.lane.b32.xlu0 %v496, 32
        %v546 = vpop.permute.xlu0 %545
        %547 = vrot.lane.b32.xlu0 %v497, 32
        %v548 = vpop.permute.xlu0 %547
        %549 = vrot.lane.b32.xlu0 %v498, 32
        %v550 = vpop.permute.xlu0 %549
        %577 = vrot.lane.b32.xlu0 %v499, 64
        %v578 = vpop.permute.xlu0 %577
        %579 = vrot.lane.b32.xlu0 %v500, 64
        %v580 = vpop.permute.xlu0 %579
        %581 = vrot.lane.b32.xlu0 %v501, 64
        %v582 = vpop.permute.xlu0 %581
        %583 = vrot.lane.b32.xlu0 %v502, 64
        %v584 = vpop.permute.xlu0 %583
        %585 = vrot.lane.b32.xlu0 %v503, 64
        %v586 = vpop.permute.xlu0 %585
        %587 = vrot.lane.b32.xlu0 %v504, 64
        %v588 = vpop.permute.xlu0 %587
        %589 = vrot.lane.b32.xlu0 %v505, 64
        %v590 = vpop.permute.xlu0 %589
        %591 = vrot.lane.b32.xlu0 %v506, 64
        %v592 = vpop.permute.xlu0 %591
        %593 = vrot.lane.b32.xlu0 %v507, 64
        %v594 = vpop.permute.xlu0 %593
        %595 = vrot.lane.b32.xlu0 %v508, 64
        %v596 = vpop.permute.xlu0 %595
        %597 = vrot.lane.b32.xlu0 %v509, 64
        %v598 = vpop.permute.xlu0 %597
        %599 = vrot.lane.b32.xlu0 %v510, 64
        %v600 = vpop.permute.xlu0 %599
        %601 = vrot.lane.b32.xlu0 %v511, 64
        %v602 = vpop.permute.xlu0 %601
        %vm616 = vcmask 261120
        %v617 = vsel %vm616, %v473, %v526
        %v618 = vsel %vm616, %v474, %v528
        %v619 = vsel %vm616, %v475, %v530
        %v620 = vsel %vm616, %v476, %v532
        %v621 = vsel %vm616, %v477, %v534
        %v622 = vsel %vm616, %v478, %v536
        %v623 = vsel %vm616, %v479, %v538
        %v624 = vsel %vm616, %v480, %v540
        %v625 = vsel %vm616, %v481, %v542
        %v626 = vsel %vm616, %v482, %v544
        %v627 = vsel %vm616, %v483, %v546
        %v628 = vsel %vm616, %v484, %v548
        %v629 = vsel %vm616, %v485, %v550
        %vm630 = vcmask 523264
        %v631 = vsel %vm630, %v617, %v578
        %v632 = vsel %vm630, %v618, %v580
        %v633 = vsel %vm630, %v619, %v582
        %v634 = vsel %vm630, %v620, %v584
        %v635 = vsel %vm630, %v621, %v586
        %v636 = vsel %vm630, %v622, %v588
        %v637 = vsel %vm630, %v623, %v590
        %v638 = vsel %vm630, %v624, %v592
        %v639 = vsel %vm630, %v625, %v594
        %v640 = vsel %vm630, %v626, %v596
        %v641 = vsel %vm630, %v627, %v598
        %v642 = vsel %vm630, %v628, %v600
        %v643 = vsel %vm630, %v629, %v602
        %vm644 = vcmask 785408
        %v645 = vsel %vm644, %v631, 0.0
        %v646 = vsel %vm644, %v632, 0.0
        %v647 = vsel %vm644, %v633, 0.0
        %v648 = vsel %vm644, %v634, 0.0
        %v649 = vsel %vm644, %v635, 0.0
        %v650 = vsel %vm644, %v636, 0.0
        %v651 = vsel %vm644, %v637, 0.0
        %v652 = vsel %vm644, %v638, 0.0
        %v653 = vsel %vm644, %v639, 0.0
        %v654 = vsel %vm644, %v640, 0.0
        %v655 = vsel %vm644, %v641, 0.0
        %v656 = vsel %vm644, %v642, 0.0
        %v657 = vsel %vm644, %v643, 0.0
        %v658 = vpack.c.bf16 %v646, %v645
        %v659 = vpack.c.bf16 %v648, %v647
        %v660 = vpack.c.bf16 %v650, %v649
        %v661 = vpack.c.bf16 %v652, %v651
        %v662 = vpack.c.bf16 %v654, %v653
        %v663 = vpack.c.bf16 %v656, %v655
        %v664 = vpack.c.bf16 %v657, %v657
        %v665 = vld [vmem:[%s5] sm:$0xff]
        %v666 = vld [vmem:[%s5 + $0x8] sm:$0xff]
        %v667 = vld [vmem:[%s5 + $0x10] sm:$0xff]
        %v668 = vld [vmem:[%s5 + $0x18] sm:$0xff]
        %v669 = vld [vmem:[%s5 + $0x20] sm:$0xff]
        %v670 = vld [vmem:[%s5 + $0x28] sm:$0xff]
        %v671 = vld [vmem:[%s5 + $0x30] sm:$0xff]
        %v672 = vld [vmem:[%s5 + $0x38] sm:$0xff]
        %v673 = vld [vmem:[%s5 + $0x40] sm:$0xff]
        %v674 = vld [vmem:[%s5 + $0x48] sm:$0xff]
        %v675 = vld [vmem:[%s5 + $0x50] sm:$0xff]
        %v676 = vld [vmem:[%s5 + $0x58] sm:$0xff]
        %v677 = vld [vmem:[%s5 + $0x60] sm:$0xff]
        %v678 = vld [vmem:[%s5 + $0x68] sm:$0xff]
        %v679 = vld [vmem:[%s5 + $0x70] sm:$0xff]
        %v680 = vld [vmem:[%s5 + $0x78] sm:$0xff]
        %v681 = vld [vmem:[%s5 + $0x80] sm:$0xff]
        %v682 = vld [vmem:[%s5 + $0x88] sm:$0xff]
        %v683 = vld [vmem:[%s5 + $0x90] sm:$0xff]
        %v684 = vld [vmem:[%s5 + $0x98] sm:$0xff]
        %v685 = vld [vmem:[%s5 + $0xa0] sm:$0xff]
        %v686 = vld [vmem:[%s5 + $0xa8] sm:$0xff]
        %v687 = vld [vmem:[%s5 + $0xb0] sm:$0xff]
        %v688 = vld [vmem:[%s5 + $0xb8] sm:$0xff]
        %v689 = vld [vmem:[%s5 + $0xc0] sm:$0xff]
        %v690 = vld [vmem:[%s5 + $0xc8] sm:$0xff]
        %v691 = vld [vmem:[%s5 + $0xd0] sm:$0xff]
        %v692 = vld [vmem:[%s5 + $0xd8] sm:$0xff]
        %v693 = vld [vmem:[%s5 + $0xe0] sm:$0xff]
        %v694 = vld [vmem:[%s5 + $0xe8] sm:$0xff]
        %v695 = vld [vmem:[%s5 + $0xf0] sm:$0xff]
        %v696 = vld [vmem:[%s5 + $0xf8] sm:$0xff]
        %v697 = vld [vmem:[%s6] sm:$0xf]
        %v699 = vlaneseq
        %v700 = vshrl.u32 %v699, 7
        %v701 = vsub.s32 0, %v700
        %v702 = vrot.slane %v697, %v701
        %v703 = vlaneseq
        %v704 = vshrl.u32 %v703, 7
        %v705 = vsub.s32 1, %v704
        %v706 = vrot.slane %v697, %v705
        %v707 = vlaneseq
        %v708 = vshrl.u32 %v707, 7
        %v709 = vsub.s32 2, %v708
        %v710 = vrot.slane %v697, %v709
        %v711 = vlaneseq
        %v712 = vshrl.u32 %v711, 7
        %v713 = vsub.s32 3, %v712
        %v714 = vrot.slane %v697, %v713
        %v751 = vunpack.c.l.b16 %v665
        %v752 = vunpack.c.h.b16 %v665
        %v753 = vunpack.c.l.b16 %v666
        %v754 = vunpack.c.h.b16 %v666
        %v755 = vunpack.c.l.b16 %v667
        %v756 = vunpack.c.h.b16 %v667
        %v757 = vunpack.c.l.b16 %v668
        %v758 = vunpack.c.h.b16 %v668
        %v759 = vunpack.c.l.b16 %v669
        %v760 = vunpack.c.h.b16 %v669
        %v761 = vunpack.c.l.b16 %v670
        %v762 = vunpack.c.h.b16 %v670
        %v763 = vunpack.c.l.b16 %v671
        %v764 = vunpack.c.h.b16 %v671
        %v765 = vunpack.c.l.b16 %v672
        %v766 = vunpack.c.h.b16 %v672
        %v767 = vunpack.c.l.b16 %v673
        %v768 = vunpack.c.h.b16 %v673
        %v769 = vunpack.c.l.b16 %v674
        %v770 = vunpack.c.h.b16 %v674
        %v771 = vunpack.c.l.b16 %v675
        %v772 = vunpack.c.h.b16 %v675
        %v773 = vunpack.c.l.b16 %v676
        %v774 = vunpack.c.h.b16 %v676
        %v775 = vunpack.c.l.b16 %v677
        %v776 = vunpack.c.h.b16 %v677
        %v777 = vunpack.c.l.b16 %v678
        %v778 = vunpack.c.h.b16 %v678
        %v779 = vunpack.c.l.b16 %v679
        %v780 = vunpack.c.h.b16 %v679
        %v781 = vunpack.c.l.b16 %v680
        %v782 = vunpack.c.h.b16 %v680
        %v783 = vunpack.c.l.b16 %v681
        %v784 = vunpack.c.h.b16 %v681
        %v785 = vunpack.c.l.b16 %v682
        %v786 = vunpack.c.h.b16 %v682
        %v787 = vunpack.c.l.b16 %v683
        %v788 = vunpack.c.h.b16 %v683
        %v789 = vunpack.c.l.b16 %v684
        %v790 = vunpack.c.h.b16 %v684
        %v791 = vunpack.c.l.b16 %v685
        %v792 = vunpack.c.h.b16 %v685
        %v793 = vunpack.c.l.b16 %v686
        %v794 = vunpack.c.h.b16 %v686
        %v795 = vunpack.c.l.b16 %v687
        %v796 = vunpack.c.h.b16 %v687
        %v797 = vunpack.c.l.b16 %v688
        %v798 = vunpack.c.h.b16 %v688
        %v799 = vunpack.c.l.b16 %v689
        %v800 = vunpack.c.h.b16 %v689
        %v801 = vunpack.c.l.b16 %v690
        %v802 = vunpack.c.h.b16 %v690
        %v803 = vunpack.c.l.b16 %v691
        %v804 = vunpack.c.h.b16 %v691
        %v805 = vunpack.c.l.b16 %v692
        %v806 = vunpack.c.h.b16 %v692
        %v807 = vunpack.c.l.b16 %v693
        %v808 = vunpack.c.h.b16 %v693
        %v809 = vunpack.c.l.b16 %v694
        %v810 = vunpack.c.h.b16 %v694
        %v811 = vunpack.c.l.b16 %v695
        %v812 = vunpack.c.h.b16 %v695
        %v813 = vunpack.c.l.b16 %v696
        %v814 = vunpack.c.h.b16 %v696
        %v815 = vpack.c.b16 %v755, %v751
        %v816 = vpack.c.b16 %v756, %v752
        %v817 = vpack.c.b16 %v757, %v753
        %v818 = vpack.c.b16 %v758, %v754
        %v819 = vpack.c.b16 %v763, %v759
        %v820 = vpack.c.b16 %v764, %v760
        %v821 = vpack.c.b16 %v765, %v761
        %v822 = vpack.c.b16 %v766, %v762
        %v823 = vpack.c.b16 %v771, %v767
        %v824 = vpack.c.b16 %v772, %v768
        %v825 = vpack.c.b16 %v773, %v769
        %v826 = vpack.c.b16 %v774, %v770
        %v827 = vpack.c.b16 %v779, %v775
        %v828 = vpack.c.b16 %v780, %v776
        %v829 = vpack.c.b16 %v781, %v777
        %v830 = vpack.c.b16 %v782, %v778
        %v831 = vpack.c.b16 %v787, %v783
        %v832 = vpack.c.b16 %v788, %v784
        %v833 = vpack.c.b16 %v789, %v785
        %v834 = vpack.c.b16 %v790, %v786
        %v835 = vpack.c.b16 %v795, %v791
        %v836 = vpack.c.b16 %v796, %v792
        %v837 = vpack.c.b16 %v797, %v793
        %v838 = vpack.c.b16 %v798, %v794
        %v839 = vpack.c.b16 %v803, %v799
        %v840 = vpack.c.b16 %v804, %v800
        %v841 = vpack.c.b16 %v805, %v801
        %v842 = vpack.c.b16 %v806, %v802
        %v843 = vpack.c.b16 %v811, %v807
        %v844 = vpack.c.b16 %v812, %v808
        %v845 = vpack.c.b16 %v813, %v809
        %v846 = vpack.c.b16 %v814, %v810
        %879 = vmatprep.subr.bf16.mxu0 %v844
        %880 = vmatpush1.bf16.msra.mxu0 %v843
        %881 = vmatprep.subr.bf16.mxu0 %v840
        %882 = vmatpush1.bf16.msra.mxu0 %v839
        %883 = vmatprep.subr.bf16.mxu0 %v836
        %884 = vmatpush1.bf16.msra.mxu0 %v835
        %885 = vmatprep.subr.bf16.mxu0 %v832
        %886 = vmatpush1.bf16.msra.mxu0 %v831
        %887 = vmatprep.subr.bf16.mxu0 %v828
        %888 = vmatpush1.bf16.msra.mxu0 %v827
        %889 = vmatprep.subr.bf16.mxu0 %v824
        %890 = vmatpush1.bf16.msra.mxu0 %v823
        %891 = vmatprep.subr.bf16.mxu0 %v820
        %892 = vmatpush1.bf16.msra.mxu0 %v819
        %893 = vmatprep.subr.bf16.mxu0 %v816
        %894 = vmatpush1.bf16.msra.mxu0 %v815
        %895 = vmatprep.subr.bf16.mxu0 0
        %896 = vmatpush2.bf16.msra.mxu0 0
        %897 = vmatprep.subr.bf16.mxu0 0
        %898 = vmatpush2.bf16.msra.mxu0 0
        %899 = vmatprep.subr.bf16.mxu0 0
        %900 = vmatpush2.bf16.msra.mxu0 0
        %901 = vmatprep.subr.bf16.mxu0 0
        %902 = vmatpush2.bf16.msra.mxu0 0
        %903 = vmatprep.subr.bf16.mxu0 0
        %904 = vmatpush2.bf16.msra.mxu0 0
        %905 = vmatprep.subr.bf16.mxu0 0
        %906 = vmatpush2.bf16.msra.mxu0 0
        %907 = vmatprep.subr.bf16.mxu0 0
        %908 = vmatpush2.bf16.msra.mxu0 0
        %909 = vmatprep.subr.bf16.mxu0 0
        %910 = vmatpush2.bf16.msra.mxu0 0
        %911 = vmatprep.mubr.bf16.mxu0 0
        %912 = vmatmul.mubr.bf16.gmra.mxu0 %v658
        %v913 = vpop.f32.mrf.mxu0
        %v914 = vadd.f32 %v702, %v913
        %v915 = vpop.f32.mrf.mxu0
        %v916 = vadd.f32 %v706, %v915
        %v917 = vpop.f32.mrf.mxu0
        %v918 = vadd.f32 %v702, %v917
        %v919 = vpop.f32.mrf.mxu0
        %v920 = vadd.f32 %v706, %v919
        %921 = vmatprep.mubr.bf16.mxu0 0
        %922 = vmatmul.mubr.bf16.gmra.mxu0 %v659
        %v923 = vpop.f32.mrf.mxu0
        %v924 = vadd.f32 %v702, %v923
        %v925 = vpop.f32.mrf.mxu0
        %v926 = vadd.f32 %v706, %v925
        %v927 = vpop.f32.mrf.mxu0
        %v928 = vadd.f32 %v702, %v927
        %v929 = vpop.f32.mrf.mxu0
        %v930 = vadd.f32 %v706, %v929
        %931 = vmatprep.mubr.bf16.mxu0 0
        %932 = vmatmul.mubr.bf16.gmra.mxu0 %v660
        %v933 = vpop.f32.mrf.mxu0
        %v934 = vadd.f32 %v702, %v933
        %v935 = vpop.f32.mrf.mxu0
        %v936 = vadd.f32 %v706, %v935
        %v937 = vpop.f32.mrf.mxu0
        %v938 = vadd.f32 %v702, %v937
        %v939 = vpop.f32.mrf.mxu0
        %v940 = vadd.f32 %v706, %v939
        %941 = vmatprep.mubr.bf16.mxu0 0
        %942 = vmatmul.mubr.bf16.gmra.mxu0 %v661
        %v943 = vpop.f32.mrf.mxu0
        %v944 = vadd.f32 %v702, %v943
        %v945 = vpop.f32.mrf.mxu0
        %v946 = vadd.f32 %v706, %v945
        %v947 = vpop.f32.mrf.mxu0
        %v948 = vadd.f32 %v702, %v947
        %v949 = vpop.f32.mrf.mxu0
        %v950 = vadd.f32 %v706, %v949
        %951 = vmatprep.mubr.bf16.mxu0 0
        %952 = vmatmul.mubr.bf16.gmra.mxu0 %v662
        %v953 = vpop.f32.mrf.mxu0
        %v954 = vadd.f32 %v702, %v953
        %v955 = vpop.f32.mrf.mxu0
        %v956 = vadd.f32 %v706, %v955
        %v957 = vpop.f32.mrf.mxu0
        %v958 = vadd.f32 %v702, %v957
        %v959 = vpop.f32.mrf.mxu0
        %v960 = vadd.f32 %v706, %v959
        %961 = vmatprep.mubr.bf16.mxu0 0
        %962 = vmatmul.mubr.bf16.gmra.mxu0 %v663
        %v963 = vpop.f32.mrf.mxu0
        %v964 = vadd.f32 %v702, %v963
        %v965 = vpop.f32.mrf.mxu0
        %v966 = vadd.f32 %v706, %v965
        %v967 = vpop.f32.mrf.mxu0
        %v968 = vadd.f32 %v702, %v967
        %v969 = vpop.f32.mrf.mxu0
        %v970 = vadd.f32 %v706, %v969
        %971 = vmatprep.mubr.bf16.mxu0 0
        %972 = vmatmul.mubr.bf16.gmra.mxu0 %v664
        %v973 = vpop.f32.mrf.mxu0
        %v974 = vadd.f32 %v702, %v973
        %v975 = vpop.f32.mrf.mxu0
        %v976 = vadd.f32 %v706, %v975
        %v977 = vpop.f32.mrf.mxu0
        %v978 = vpop.f32.mrf.mxu0
        %979 = vdwg.mxu0
        %980 = vmatprep.subr.bf16.mxu0 %v846
        %981 = vmatpush1.bf16.msra.mxu0 %v845
        %982 = vmatprep.subr.bf16.mxu0 %v842
        %983 = vmatpush1.bf16.msra.mxu0 %v841
        %984 = vmatprep.subr.bf16.mxu0 %v838
        %985 = vmatpush1.bf16.msra.mxu0 %v837
        %986 = vmatprep.subr.bf16.mxu0 %v834
        %987 = vmatpush1.bf16.msra.mxu0 %v833
        %988 = vmatprep.subr.bf16.mxu0 %v830
        %989 = vmatpush1.bf16.msra.mxu0 %v829
        %990 = vmatprep.subr.bf16.mxu0 %v826
        %991 = vmatpush1.bf16.msra.mxu0 %v825
        %992 = vmatprep.subr.bf16.mxu0 %v822
        %993 = vmatpush1.bf16.msra.mxu0 %v821
        %994 = vmatprep.subr.bf16.mxu0 %v818
        %995 = vmatpush1.bf16.msra.mxu0 %v817
        %996 = vmatprep.subr.bf16.mxu0 0
        %997 = vmatpush2.bf16.msra.mxu0 0
        %998 = vmatprep.subr.bf16.mxu0 0
        %999 = vmatpush2.bf16.msra.mxu0 0
        %1000 = vmatprep.subr.bf16.mxu0 0
        %1001 = vmatpush2.bf16.msra.mxu0 0
        %1002 = vmatprep.subr.bf16.mxu0 0
        %1003 = vmatpush2.bf16.msra.mxu0 0
        %1004 = vmatprep.subr.bf16.mxu0 0
        %1005 = vmatpush2.bf16.msra.mxu0 0
        %1006 = vmatprep.subr.bf16.mxu0 0
        %1007 = vmatpush2.bf16.msra.mxu0 0
        %1008 = vmatprep.subr.bf16.mxu0 0
        %1009 = vmatpush2.bf16.msra.mxu0 0
        %1010 = vmatprep.subr.bf16.mxu0 0
        %1011 = vmatpush2.bf16.msra.mxu0 0
        %1012 = vmatprep.mubr.bf16.mxu0 0
        %1013 = vmatmul.mubr.bf16.gmra.mxu0 %v658
        %v1014 = vpop.f32.mrf.mxu0
        %v1015 = vadd.f32 %v710, %v1014
        %v1016 = vpop.f32.mrf.mxu0
        %v1017 = vadd.f32 %v714, %v1016
        %v1018 = vpop.f32.mrf.mxu0
        %v1019 = vadd.f32 %v710, %v1018
        %v1020 = vpop.f32.mrf.mxu0
        %v1021 = vadd.f32 %v714, %v1020
        %1022 = vmatprep.mubr.bf16.mxu0 0
        %1023 = vmatmul.mubr.bf16.gmra.mxu0 %v659
        %v1024 = vpop.f32.mrf.mxu0
        %v1025 = vadd.f32 %v710, %v1024
        %v1026 = vpop.f32.mrf.mxu0
        %v1027 = vadd.f32 %v714, %v1026
        %v1028 = vpop.f32.mrf.mxu0
        %v1029 = vadd.f32 %v710, %v1028
        %v1030 = vpop.f32.mrf.mxu0
        %v1031 = vadd.f32 %v714, %v1030
        %1032 = vmatprep.mubr.bf16.mxu0 0
        %1033 = vmatmul.mubr.bf16.gmra.mxu0 %v660
        %v1034 = vpop.f32.mrf.mxu0
        %v1035 = vadd.f32 %v710, %v1034
        %v1036 = vpop.f32.mrf.mxu0
        %v1037 = vadd.f32 %v714, %v1036
        %v1038 = vpop.f32.mrf.mxu0
        %v1039 = vadd.f32 %v710, %v1038
        %v1040 = vpop.f32.mrf.mxu0
        %v1041 = vadd.f32 %v714, %v1040
        %1042 = vmatprep.mubr.bf16.mxu0 0
        %1043 = vmatmul.mubr.bf16.gmra.mxu0 %v661
        %v1044 = vpop.f32.mrf.mxu0
        %v1045 = vadd.f32 %v710, %v1044
        %v1046 = vpop.f32.mrf.mxu0
        %v1047 = vadd.f32 %v714, %v1046
        %v1048 = vpop.f32.mrf.mxu0
        %v1049 = vadd.f32 %v710, %v1048
        %v1050 = vpop.f32.mrf.mxu0
        %v1051 = vadd.f32 %v714, %v1050
        %1052 = vmatprep.mubr.bf16.mxu0 0
        %1053 = vmatmul.mubr.bf16.gmra.mxu0 %v662
        %v1054 = vpop.f32.mrf.mxu0
        %v1055 = vadd.f32 %v710, %v1054
        %v1056 = vpop.f32.mrf.mxu0
        %v1057 = vadd.f32 %v714, %v1056
        %v1058 = vpop.f32.mrf.mxu0
        %v1059 = vadd.f32 %v710, %v1058
        %v1060 = vpop.f32.mrf.mxu0
        %v1061 = vadd.f32 %v714, %v1060
        %1062 = vmatprep.mubr.bf16.mxu0 0
        %1063 = vmatmul.mubr.bf16.gmra.mxu0 %v663
        %v1064 = vpop.f32.mrf.mxu0
        %v1065 = vadd.f32 %v710, %v1064
        %v1066 = vpop.f32.mrf.mxu0
        %v1067 = vadd.f32 %v714, %v1066
        %v1068 = vpop.f32.mrf.mxu0
        %v1069 = vadd.f32 %v710, %v1068
        %v1070 = vpop.f32.mrf.mxu0
        %v1071 = vadd.f32 %v714, %v1070
        %1072 = vmatprep.mubr.bf16.mxu0 0
        %1073 = vmatmul.mubr.bf16.gmra.mxu0 %v664
        %v1074 = vpop.f32.mrf.mxu0
        %v1075 = vadd.f32 %v710, %v1074
        %v1076 = vpop.f32.mrf.mxu0
        %v1077 = vadd.f32 %v714, %v1076
        %v1078 = vpop.f32.mrf.mxu0
        %v1079 = vpop.f32.mrf.mxu0
        %1080 = vdwg.mxu0
        %v1081 = vsel %vm616, %v916, 0.0
        %v1082 = vadd.f32 %v914, %v1081
        %1083 = vadd.xlane.f32.xlu0 %v1082
        %v1084 = vpop.xlane.xlu0 %1083
        %v1085 = vsel %vm616, %v920, 0.0
        %v1086 = vadd.f32 %v918, %v1085
        %1087 = vadd.xlane.f32.xlu0 %v1086
        %v1088 = vpop.xlane.xlu0 %1087
        %v1089 = vsel %vm616, %v926, 0.0
        %v1090 = vadd.f32 %v924, %v1089
        %1091 = vadd.xlane.f32.xlu0 %v1090
        %v1092 = vpop.xlane.xlu0 %1091
        %v1093 = vsel %vm616, %v930, 0.0
        %v1094 = vadd.f32 %v928, %v1093
        %1095 = vadd.xlane.f32.xlu0 %v1094
        %v1096 = vpop.xlane.xlu0 %1095
        %v1097 = vsel %vm616, %v936, 0.0
        %v1098 = vadd.f32 %v934, %v1097
        %1099 = vadd.xlane.f32.xlu0 %v1098
        %v1100 = vpop.xlane.xlu0 %1099
        %v1101 = vsel %vm616, %v940, 0.0
        %v1102 = vadd.f32 %v938, %v1101
        %1103 = vadd.xlane.f32.xlu0 %v1102
        %v1104 = vpop.xlane.xlu0 %1103
        %v1105 = vsel %vm616, %v946, 0.0
        %v1106 = vadd.f32 %v944, %v1105
        %1107 = vadd.xlane.f32.xlu0 %v1106
        %v1108 = vpop.xlane.xlu0 %1107
        %v1109 = vsel %vm616, %v950, 0.0
        %v1110 = vadd.f32 %v948, %v1109
        %1111 = vadd.xlane.f32.xlu0 %v1110
        %v1112 = vpop.xlane.xlu0 %1111
        %v1113 = vsel %vm616, %v956, 0.0
        %v1114 = vadd.f32 %v954, %v1113
        %1115 = vadd.xlane.f32.xlu0 %v1114
        %v1116 = vpop.xlane.xlu0 %1115
        %v1117 = vsel %vm616, %v960, 0.0
        %v1118 = vadd.f32 %v958, %v1117
        %1119 = vadd.xlane.f32.xlu0 %v1118
        %v1120 = vpop.xlane.xlu0 %1119
        %v1121 = vsel %vm616, %v966, 0.0
        %v1122 = vadd.f32 %v964, %v1121
        %1123 = vadd.xlane.f32.xlu0 %v1122
        %v1124 = vpop.xlane.xlu0 %1123
        %v1125 = vsel %vm616, %v970, 0.0
        %v1126 = vadd.f32 %v968, %v1125
        %1127 = vadd.xlane.f32.xlu0 %v1126
        %v1128 = vpop.xlane.xlu0 %1127
        %v1129 = vsel %vm616, %v976, 0.0
        %v1130 = vadd.f32 %v974, %v1129
        %1131 = vadd.xlane.f32.xlu0 %v1130
        %v1132 = vpop.xlane.xlu0 %1131
        %v1133 = vrcp.pop 160.0
        %v1134 = vmul.f32 %v1084, %v1133
        %v1135 = vmul.f32 %v1088, %v1133
        %v1136 = vmul.f32 %v1092, %v1133
        %v1137 = vmul.f32 %v1096, %v1133
        %v1138 = vmul.f32 %v1100, %v1133
        %v1139 = vmul.f32 %v1104, %v1133
        %v1140 = vmul.f32 %v1108, %v1133
        %v1141 = vmul.f32 %v1112, %v1133
        %v1142 = vmul.f32 %v1116, %v1133
        %v1143 = vmul.f32 %v1120, %v1133
        %v1144 = vmul.f32 %v1124, %v1133
        %v1145 = vmul.f32 %v1128, %v1133
        %v1146 = vmul.f32 %v1132, %v1133
        %v1147 = vsub.f32 %v914, %v1134
        %v1148 = vsub.f32 %v916, %v1134
        %v1149 = vsub.f32 %v918, %v1135
        %v1150 = vsub.f32 %v920, %v1135
        %v1151 = vsub.f32 %v924, %v1136
        %v1152 = vsub.f32 %v926, %v1136
        %v1153 = vsub.f32 %v928, %v1137
        %v1154 = vsub.f32 %v930, %v1137
        %v1155 = vsub.f32 %v934, %v1138
        %v1156 = vsub.f32 %v936, %v1138
        %v1157 = vsub.f32 %v938, %v1139
        %v1158 = vsub.f32 %v940, %v1139
        %v1159 = vsub.f32 %v944, %v1140
        %v1160 = vsub.f32 %v946, %v1140
        %v1161 = vsub.f32 %v948, %v1141
        %v1162 = vsub.f32 %v950, %v1141
        %v1163 = vsub.f32 %v954, %v1142
        %v1164 = vsub.f32 %v956, %v1142
        %v1165 = vsub.f32 %v958, %v1143
        %v1166 = vsub.f32 %v960, %v1143
        %v1167 = vsub.f32 %v964, %v1144
        %v1168 = vsub.f32 %v966, %v1144
        %v1169 = vsub.f32 %v968, %v1145
        %v1170 = vsub.f32 %v970, %v1145
        %v1171 = vsub.f32 %v974, %v1146
        %v1172 = vsub.f32 %v976, %v1146
        %v1173 = vmul.f32 %v1147, %v1147
        %v1174 = vmul.f32 %v1148, %v1148
        %v1175 = vmul.f32 %v1149, %v1149
        %v1176 = vmul.f32 %v1150, %v1150
        %v1177 = vmul.f32 %v1151, %v1151
        %v1178 = vmul.f32 %v1152, %v1152
        %v1179 = vmul.f32 %v1153, %v1153
        %v1180 = vmul.f32 %v1154, %v1154
        %v1181 = vmul.f32 %v1155, %v1155
        %v1182 = vmul.f32 %v1156, %v1156
        %v1183 = vmul.f32 %v1157, %v1157
        %v1184 = vmul.f32 %v1158, %v1158
        %v1185 = vmul.f32 %v1159, %v1159
        %v1186 = vmul.f32 %v1160, %v1160
        %v1187 = vmul.f32 %v1161, %v1161
        %v1188 = vmul.f32 %v1162, %v1162
        %v1189 = vmul.f32 %v1163, %v1163
        %v1190 = vmul.f32 %v1164, %v1164
        %v1191 = vmul.f32 %v1165, %v1165
        %v1192 = vmul.f32 %v1166, %v1166
        %v1193 = vmul.f32 %v1167, %v1167
        %v1194 = vmul.f32 %v1168, %v1168
        %v1195 = vmul.f32 %v1169, %v1169
        %v1196 = vmul.f32 %v1170, %v1170
        %v1197 = vmul.f32 %v1171, %v1171
        %v1198 = vmul.f32 %v1172, %v1172
        %v1199 = vsel %vm616, %v1174, 0.0
        %v1200 = vadd.f32 %v1173, %v1199
        %1201 = vadd.xlane.f32.xlu0 %v1200
        %v1202 = vpop.xlane.xlu0 %1201
        %v1203 = vsel %vm616, %v1176, 0.0
        %v1204 = vadd.f32 %v1175, %v1203
        %1205 = vadd.xlane.f32.xlu0 %v1204
        %v1206 = vpop.xlane.xlu0 %1205
        %v1207 = vsel %vm616, %v1178, 0.0
        %v1208 = vadd.f32 %v1177, %v1207
        %1209 = vadd.xlane.f32.xlu0 %v1208
        %v1210 = vpop.xlane.xlu0 %1209
        %v1211 = vsel %vm616, %v1180, 0.0
        %v1212 = vadd.f32 %v1179, %v1211
        %1213 = vadd.xlane.f32.xlu0 %v1212
        %v1214 = vpop.xlane.xlu0 %1213
        %v1215 = vsel %vm616, %v1182, 0.0
        %v1216 = vadd.f32 %v1181, %v1215
        %1217 = vadd.xlane.f32.xlu0 %v1216
        %v1218 = vpop.xlane.xlu0 %1217
        %v1219 = vsel %vm616, %v1184, 0.0
        %v1220 = vadd.f32 %v1183, %v1219
        %1221 = vadd.xlane.f32.xlu0 %v1220
        %v1222 = vpop.xlane.xlu0 %1221
        %v1223 = vsel %vm616, %v1186, 0.0
        %v1224 = vadd.f32 %v1185, %v1223
        %1225 = vadd.xlane.f32.xlu0 %v1224
        %v1226 = vpop.xlane.xlu0 %1225
        %v1227 = vsel %vm616, %v1188, 0.0
        %v1228 = vadd.f32 %v1187, %v1227
        %1229 = vadd.xlane.f32.xlu0 %v1228
        %v1230 = vpop.xlane.xlu0 %1229
        %v1231 = vsel %vm616, %v1190, 0.0
        %v1232 = vadd.f32 %v1189, %v1231
        %1233 = vadd.xlane.f32.xlu0 %v1232
        %v1234 = vpop.xlane.xlu0 %1233
        %v1235 = vsel %vm616, %v1192, 0.0
        %v1236 = vadd.f32 %v1191, %v1235
        %1237 = vadd.xlane.f32.xlu0 %v1236
        %v1238 = vpop.xlane.xlu0 %1237
        %v1239 = vsel %vm616, %v1194, 0.0
        %v1240 = vadd.f32 %v1193, %v1239
        %1241 = vadd.xlane.f32.xlu0 %v1240
        %v1242 = vpop.xlane.xlu0 %1241
        %v1243 = vsel %vm616, %v1196, 0.0
        %v1244 = vadd.f32 %v1195, %v1243
        %1245 = vadd.xlane.f32.xlu0 %v1244
        %v1246 = vpop.xlane.xlu0 %1245
        %v1247 = vsel %vm616, %v1198, 0.0
        %v1248 = vadd.f32 %v1197, %v1247
        %1249 = vadd.xlane.f32.xlu0 %v1248
        %v1250 = vpop.xlane.xlu0 %1249
        %v1251 = vmul.f32 %v1202, %v1133
        %v1252 = vmul.f32 %v1206, %v1133
        %v1253 = vmul.f32 %v1210, %v1133
        %v1254 = vmul.f32 %v1214, %v1133
        %v1255 = vmul.f32 %v1218, %v1133
        %v1256 = vmul.f32 %v1222, %v1133
        %v1257 = vmul.f32 %v1226, %v1133
        %v1258 = vmul.f32 %v1230, %v1133
        %v1259 = vmul.f32 %v1234, %v1133
        %v1260 = vmul.f32 %v1238, %v1133
        %v1261 = vmul.f32 %v1242, %v1133
        %v1262 = vmul.f32 %v1246, %v1133
        %v1263 = vmul.f32 %v1250, %v1133
        %v1264 = vadd.f32 %v1251, 1e-05
        %v1265 = vadd.f32 %v1252, 1e-05
        %v1266 = vadd.f32 %v1253, 1e-05
        %v1267 = vadd.f32 %v1254, 1e-05
        %v1268 = vadd.f32 %v1255, 1e-05
        %v1269 = vadd.f32 %v1256, 1e-05
        %v1270 = vadd.f32 %v1257, 1e-05
        %v1271 = vadd.f32 %v1258, 1e-05
        %v1272 = vadd.f32 %v1259, 1e-05
        %v1273 = vadd.f32 %v1260, 1e-05
        %v1274 = vadd.f32 %v1261, 1e-05
        %v1275 = vadd.f32 %v1262, 1e-05
        %v1276 = vadd.f32 %v1263, 1e-05
        %v1277 = vrsqrt.pop %v1264
        %v1278 = vrsqrt.pop %v1265
        %v1279 = vrsqrt.pop %v1266
        %v1280 = vrsqrt.pop %v1267
        %v1281 = vrsqrt.pop %v1268
        %v1282 = vrsqrt.pop %v1269
        %v1283 = vrsqrt.pop %v1270
        %v1284 = vrsqrt.pop %v1271
        %v1285 = vrsqrt.pop %v1272
        %v1286 = vrsqrt.pop %v1273
        %v1287 = vrsqrt.pop %v1274
        %v1288 = vrsqrt.pop %v1275
        %v1289 = vrsqrt.pop %v1276
        %v1290 = vmul.f32 %v1147, %v1277
        %v1291 = vmul.f32 %v1148, %v1277
        %v1292 = vmul.f32 %v1149, %v1278
        %v1293 = vmul.f32 %v1150, %v1278
        %v1294 = vmul.f32 %v1151, %v1279
        %v1295 = vmul.f32 %v1152, %v1279
        %v1296 = vmul.f32 %v1153, %v1280
        %v1297 = vmul.f32 %v1154, %v1280
        %v1298 = vmul.f32 %v1155, %v1281
        %v1299 = vmul.f32 %v1156, %v1281
        %v1300 = vmul.f32 %v1157, %v1282
        %v1301 = vmul.f32 %v1158, %v1282
        %v1302 = vmul.f32 %v1159, %v1283
        %v1303 = vmul.f32 %v1160, %v1283
        %v1304 = vmul.f32 %v1161, %v1284
        %v1305 = vmul.f32 %v1162, %v1284
        %v1306 = vmul.f32 %v1163, %v1285
        %v1307 = vmul.f32 %v1164, %v1285
        %v1308 = vmul.f32 %v1165, %v1286
        %v1309 = vmul.f32 %v1166, %v1286
        %v1310 = vmul.f32 %v1167, %v1287
        %v1311 = vmul.f32 %v1168, %v1287
        %v1312 = vmul.f32 %v1169, %v1288
        %v1313 = vmul.f32 %v1170, %v1288
        %v1314 = vmul.f32 %v1171, %v1289
        %v1315 = vmul.f32 %v1172, %v1289
        %1342 = vrot.lane.b32.xlu0 %v916, 96
        %v1343 = vpop.permute.xlu0 %1342
        %1344 = vrot.lane.b32.xlu0 %v1015, 96
        %v1345 = vpop.permute.xlu0 %1344
        %1346 = vrot.lane.b32.xlu0 %v920, 96
        %v1347 = vpop.permute.xlu0 %1346
        %1348 = vrot.lane.b32.xlu0 %v1019, 96
        %v1349 = vpop.permute.xlu0 %1348
        %1350 = vrot.lane.b32.xlu0 %v926, 96
        %v1351 = vpop.permute.xlu0 %1350
        %1352 = vrot.lane.b32.xlu0 %v1025, 96
        %v1353 = vpop.permute.xlu0 %1352
        %1354 = vrot.lane.b32.xlu0 %v930, 96
        %v1355 = vpop.permute.xlu0 %1354
        %1356 = vrot.lane.b32.xlu0 %v1029, 96
        %v1357 = vpop.permute.xlu0 %1356
        %1358 = vrot.lane.b32.xlu0 %v936, 96
        %v1359 = vpop.permute.xlu0 %1358
        %1360 = vrot.lane.b32.xlu0 %v1035, 96
        %v1361 = vpop.permute.xlu0 %1360
        %1362 = vrot.lane.b32.xlu0 %v940, 96
        %v1363 = vpop.permute.xlu0 %1362
        %1364 = vrot.lane.b32.xlu0 %v1039, 96
        %v1365 = vpop.permute.xlu0 %1364
        %1366 = vrot.lane.b32.xlu0 %v946, 96
        %v1367 = vpop.permute.xlu0 %1366
        %1368 = vrot.lane.b32.xlu0 %v1045, 96
        %v1369 = vpop.permute.xlu0 %1368
        %1370 = vrot.lane.b32.xlu0 %v950, 96
        %v1371 = vpop.permute.xlu0 %1370
        %1372 = vrot.lane.b32.xlu0 %v1049, 96
        %v1373 = vpop.permute.xlu0 %1372
        %1374 = vrot.lane.b32.xlu0 %v956, 96
        %v1375 = vpop.permute.xlu0 %1374
        %1376 = vrot.lane.b32.xlu0 %v1055, 96
        %v1377 = vpop.permute.xlu0 %1376
        %1378 = vrot.lane.b32.xlu0 %v960, 96
        %v1379 = vpop.permute.xlu0 %1378
        %1380 = vrot.lane.b32.xlu0 %v1059, 96
        %v1381 = vpop.permute.xlu0 %1380
        %1382 = vrot.lane.b32.xlu0 %v966, 96
        %v1383 = vpop.permute.xlu0 %1382
        %1384 = vrot.lane.b32.xlu0 %v1065, 96
        %v1385 = vpop.permute.xlu0 %1384
        %1386 = vrot.lane.b32.xlu0 %v970, 96
        %v1387 = vpop.permute.xlu0 %1386
        %1388 = vrot.lane.b32.xlu0 %v1069, 96
        %v1389 = vpop.permute.xlu0 %1388
        %1390 = vrot.lane.b32.xlu0 %v976, 96
        %v1391 = vpop.permute.xlu0 %1390
        %1392 = vrot.lane.b32.xlu0 %v1075, 96
        %v1393 = vpop.permute.xlu0 %1392
        %v1394 = vsel %vm644, %v1343, %v1345
        %v1395 = vsel %vm644, %v1347, %v1349
        %v1396 = vsel %vm644, %v1351, %v1353
        %v1397 = vsel %vm644, %v1355, %v1357
        %v1398 = vsel %vm644, %v1359, %v1361
        %v1399 = vsel %vm644, %v1363, %v1365
        %v1400 = vsel %vm644, %v1367, %v1369
        %v1401 = vsel %vm644, %v1371, %v1373
        %v1402 = vsel %vm644, %v1375, %v1377
        %v1403 = vsel %vm644, %v1379, %v1381
        %v1404 = vsel %vm644, %v1383, %v1385
        %v1405 = vsel %vm644, %v1387, %v1389
        %v1406 = vsel %vm644, %v1391, %v1393
        %v1433 = vsel %vm616, %v1345, 0.0
        %v1434 = vadd.f32 %v1394, %v1433
        %1435 = vadd.xlane.f32.xlu0 %v1434
        %v1436 = vpop.xlane.xlu0 %1435
        %v1437 = vsel %vm616, %v1349, 0.0
        %v1438 = vadd.f32 %v1395, %v1437
        %1439 = vadd.xlane.f32.xlu0 %v1438
        %v1440 = vpop.xlane.xlu0 %1439
        %v1441 = vsel %vm616, %v1353, 0.0
        %v1442 = vadd.f32 %v1396, %v1441
        %1443 = vadd.xlane.f32.xlu0 %v1442
        %v1444 = vpop.xlane.xlu0 %1443
        %v1445 = vsel %vm616, %v1357, 0.0
        %v1446 = vadd.f32 %v1397, %v1445
        %1447 = vadd.xlane.f32.xlu0 %v1446
        %v1448 = vpop.xlane.xlu0 %1447
        %v1449 = vsel %vm616, %v1361, 0.0
        %v1450 = vadd.f32 %v1398, %v1449
        %1451 = vadd.xlane.f32.xlu0 %v1450
        %v1452 = vpop.xlane.xlu0 %1451
        %v1453 = vsel %vm616, %v1365, 0.0
        %v1454 = vadd.f32 %v1399, %v1453
        %1455 = vadd.xlane.f32.xlu0 %v1454
        %v1456 = vpop.xlane.xlu0 %1455
        %v1457 = vsel %vm616, %v1369, 0.0
        %v1458 = vadd.f32 %v1400, %v1457
        %1459 = vadd.xlane.f32.xlu0 %v1458
        %v1460 = vpop.xlane.xlu0 %1459
        %v1461 = vsel %vm616, %v1373, 0.0
        %v1462 = vadd.f32 %v1401, %v1461
        %1463 = vadd.xlane.f32.xlu0 %v1462
        %v1464 = vpop.xlane.xlu0 %1463
        %v1465 = vsel %vm616, %v1377, 0.0
        %v1466 = vadd.f32 %v1402, %v1465
        %1467 = vadd.xlane.f32.xlu0 %v1466
        %v1468 = vpop.xlane.xlu0 %1467
        %v1469 = vsel %vm616, %v1381, 0.0
        %v1470 = vadd.f32 %v1403, %v1469
        %1471 = vadd.xlane.f32.xlu0 %v1470
        %v1472 = vpop.xlane.xlu0 %1471
        %v1473 = vsel %vm616, %v1385, 0.0
        %v1474 = vadd.f32 %v1404, %v1473
        %1475 = vadd.xlane.f32.xlu0 %v1474
        %v1476 = vpop.xlane.xlu0 %1475
        %v1477 = vsel %vm616, %v1389, 0.0
        %v1478 = vadd.f32 %v1405, %v1477
        %1479 = vadd.xlane.f32.xlu0 %v1478
        %v1480 = vpop.xlane.xlu0 %1479
        %v1481 = vsel %vm616, %v1393, 0.0
        %v1482 = vadd.f32 %v1406, %v1481
        %1483 = vadd.xlane.f32.xlu0 %v1482
        %v1484 = vpop.xlane.xlu0 %1483
        %v1485 = vmul.f32 %v1436, %v1133
        %v1486 = vmul.f32 %v1440, %v1133
        %v1487 = vmul.f32 %v1444, %v1133
        %v1488 = vmul.f32 %v1448, %v1133
        %v1489 = vmul.f32 %v1452, %v1133
        %v1490 = vmul.f32 %v1456, %v1133
        %v1491 = vmul.f32 %v1460, %v1133
        %v1492 = vmul.f32 %v1464, %v1133
        %v1493 = vmul.f32 %v1468, %v1133
        %v1494 = vmul.f32 %v1472, %v1133
        %v1495 = vmul.f32 %v1476, %v1133
        %v1496 = vmul.f32 %v1480, %v1133
        %v1497 = vmul.f32 %v1484, %v1133
        %v1498 = vsub.f32 %v916, %v1485
        %v1499 = vsub.f32 %v1015, %v1485
        %v1500 = vsub.f32 %v920, %v1486
        %v1501 = vsub.f32 %v1019, %v1486
        %v1502 = vsub.f32 %v926, %v1487
        %v1503 = vsub.f32 %v1025, %v1487
        %v1504 = vsub.f32 %v930, %v1488
        %v1505 = vsub.f32 %v1029, %v1488
        %v1506 = vsub.f32 %v936, %v1489
        %v1507 = vsub.f32 %v1035, %v1489
        %v1508 = vsub.f32 %v940, %v1490
        %v1509 = vsub.f32 %v1039, %v1490
        %v1510 = vsub.f32 %v946, %v1491
        %v1511 = vsub.f32 %v1045, %v1491
        %v1512 = vsub.f32 %v950, %v1492
        %v1513 = vsub.f32 %v1049, %v1492
        %v1514 = vsub.f32 %v956, %v1493
        %v1515 = vsub.f32 %v1055, %v1493
        %v1516 = vsub.f32 %v960, %v1494
        %v1517 = vsub.f32 %v1059, %v1494
        %v1518 = vsub.f32 %v966, %v1495
        %v1519 = vsub.f32 %v1065, %v1495
        %v1520 = vsub.f32 %v970, %v1496
        %v1521 = vsub.f32 %v1069, %v1496
        %v1522 = vsub.f32 %v976, %v1497
        %v1523 = vsub.f32 %v1075, %v1497
        %v1524 = vmul.f32 %v1498, %v1498
        %v1525 = vmul.f32 %v1499, %v1499
        %v1526 = vmul.f32 %v1500, %v1500
        %v1527 = vmul.f32 %v1501, %v1501
        %v1528 = vmul.f32 %v1502, %v1502
        %v1529 = vmul.f32 %v1503, %v1503
        %v1530 = vmul.f32 %v1504, %v1504
        %v1531 = vmul.f32 %v1505, %v1505
        %v1532 = vmul.f32 %v1506, %v1506
        %v1533 = vmul.f32 %v1507, %v1507
        %v1534 = vmul.f32 %v1508, %v1508
        %v1535 = vmul.f32 %v1509, %v1509
        %v1536 = vmul.f32 %v1510, %v1510
        %v1537 = vmul.f32 %v1511, %v1511
        %v1538 = vmul.f32 %v1512, %v1512
        %v1539 = vmul.f32 %v1513, %v1513
        %v1540 = vmul.f32 %v1514, %v1514
        %v1541 = vmul.f32 %v1515, %v1515
        %v1542 = vmul.f32 %v1516, %v1516
        %v1543 = vmul.f32 %v1517, %v1517
        %v1544 = vmul.f32 %v1518, %v1518
        %v1545 = vmul.f32 %v1519, %v1519
        %v1546 = vmul.f32 %v1520, %v1520
        %v1547 = vmul.f32 %v1521, %v1521
        %v1548 = vmul.f32 %v1522, %v1522
        %v1549 = vmul.f32 %v1523, %v1523
        %1576 = vrot.lane.b32.xlu0 %v1524, 96
        %v1577 = vpop.permute.xlu0 %1576
        %1578 = vrot.lane.b32.xlu0 %v1525, 96
        %v1579 = vpop.permute.xlu0 %1578
        %1580 = vrot.lane.b32.xlu0 %v1526, 96
        %v1581 = vpop.permute.xlu0 %1580
        %1582 = vrot.lane.b32.xlu0 %v1527, 96
        %v1583 = vpop.permute.xlu0 %1582
        %1584 = vrot.lane.b32.xlu0 %v1528, 96
        %v1585 = vpop.permute.xlu0 %1584
        %1586 = vrot.lane.b32.xlu0 %v1529, 96
        %v1587 = vpop.permute.xlu0 %1586
        %1588 = vrot.lane.b32.xlu0 %v1530, 96
        %v1589 = vpop.permute.xlu0 %1588
        %1590 = vrot.lane.b32.xlu0 %v1531, 96
        %v1591 = vpop.permute.xlu0 %1590
        %1592 = vrot.lane.b32.xlu0 %v1532, 96
        %v1593 = vpop.permute.xlu0 %1592
        %1594 = vrot.lane.b32.xlu0 %v1533, 96
        %v1595 = vpop.permute.xlu0 %1594
        %1596 = vrot.lane.b32.xlu0 %v1534, 96
        %v1597 = vpop.permute.xlu0 %1596
        %1598 = vrot.lane.b32.xlu0 %v1535, 96
        %v1599 = vpop.permute.xlu0 %1598
        %1600 = vrot.lane.b32.xlu0 %v1536, 96
        %v1601 = vpop.permute.xlu0 %1600
        %1602 = vrot.lane.b32.xlu0 %v1537, 96
        %v1603 = vpop.permute.xlu0 %1602
        %1604 = vrot.lane.b32.xlu0 %v1538, 96
        %v1605 = vpop.permute.xlu0 %1604
        %1606 = vrot.lane.b32.xlu0 %v1539, 96
        %v1607 = vpop.permute.xlu0 %1606
        %1608 = vrot.lane.b32.xlu0 %v1540, 96
        %v1609 = vpop.permute.xlu0 %1608
        %1610 = vrot.lane.b32.xlu0 %v1541, 96
        %v1611 = vpop.permute.xlu0 %1610
        %1612 = vrot.lane.b32.xlu0 %v1542, 96
        %v1613 = vpop.permute.xlu0 %1612
        %1614 = vrot.lane.b32.xlu0 %v1543, 96
        %v1615 = vpop.permute.xlu0 %1614
        %1616 = vrot.lane.b32.xlu0 %v1544, 96
        %v1617 = vpop.permute.xlu0 %1616
        %1618 = vrot.lane.b32.xlu0 %v1545, 96
        %v1619 = vpop.permute.xlu0 %1618
        %1620 = vrot.lane.b32.xlu0 %v1546, 96
        %v1621 = vpop.permute.xlu0 %1620
        %1622 = vrot.lane.b32.xlu0 %v1547, 96
        %v1623 = vpop.permute.xlu0 %1622
        %1624 = vrot.lane.b32.xlu0 %v1548, 96
        %v1625 = vpop.permute.xlu0 %1624
        %1626 = vrot.lane.b32.xlu0 %v1549, 96
        %v1627 = vpop.permute.xlu0 %1626
        %v1628 = vsel %vm644, %v1577, %v1579
        %v1629 = vsel %vm644, %v1581, %v1583
        %v1630 = vsel %vm644, %v1585, %v1587
        %v1631 = vsel %vm644, %v1589, %v1591
        %v1632 = vsel %vm644, %v1593, %v1595
        %v1633 = vsel %vm644, %v1597, %v1599
        %v1634 = vsel %vm644, %v1601, %v1603
        %v1635 = vsel %vm644, %v1605, %v1607
        %v1636 = vsel %vm644, %v1609, %v1611
        %v1637 = vsel %vm644, %v1613, %v1615
        %v1638 = vsel %vm644, %v1617, %v1619
        %v1639 = vsel %vm644, %v1621, %v1623
        %v1640 = vsel %vm644, %v1625, %v1627
        %v1667 = vsel %vm616, %v1579, 0.0
        %v1668 = vadd.f32 %v1628, %v1667
        %1669 = vadd.xlane.f32.xlu0 %v1668
        %v1670 = vpop.xlane.xlu0 %1669
        %v1671 = vsel %vm616, %v1583, 0.0
        %v1672 = vadd.f32 %v1629, %v1671
        %1673 = vadd.xlane.f32.xlu0 %v1672
        %v1674 = vpop.xlane.xlu0 %1673
        %v1675 = vsel %vm616, %v1587, 0.0
        %v1676 = vadd.f32 %v1630, %v1675
        %1677 = vadd.xlane.f32.xlu0 %v1676
        %v1678 = vpop.xlane.xlu0 %1677
        %v1679 = vsel %vm616, %v1591, 0.0
        %v1680 = vadd.f32 %v1631, %v1679
        %1681 = vadd.xlane.f32.xlu0 %v1680
        %v1682 = vpop.xlane.xlu0 %1681
        %v1683 = vsel %vm616, %v1595, 0.0
        %v1684 = vadd.f32 %v1632, %v1683
        %1685 = vadd.xlane.f32.xlu0 %v1684
        %v1686 = vpop.xlane.xlu0 %1685
        %v1687 = vsel %vm616, %v1599, 0.0
        %v1688 = vadd.f32 %v1633, %v1687
        %1689 = vadd.xlane.f32.xlu0 %v1688
        %v1690 = vpop.xlane.xlu0 %1689
        %v1691 = vsel %vm616, %v1603, 0.0
        %v1692 = vadd.f32 %v1634, %v1691
        %1693 = vadd.xlane.f32.xlu0 %v1692
        %v1694 = vpop.xlane.xlu0 %1693
        %v1695 = vsel %vm616, %v1607, 0.0
        %v1696 = vadd.f32 %v1635, %v1695
        %1697 = vadd.xlane.f32.xlu0 %v1696
        %v1698 = vpop.xlane.xlu0 %1697
        %v1699 = vsel %vm616, %v1611, 0.0
        %v1700 = vadd.f32 %v1636, %v1699
        %1701 = vadd.xlane.f32.xlu0 %v1700
        %v1702 = vpop.xlane.xlu0 %1701
        %v1703 = vsel %vm616, %v1615, 0.0
        %v1704 = vadd.f32 %v1637, %v1703
        %1705 = vadd.xlane.f32.xlu0 %v1704
        %v1706 = vpop.xlane.xlu0 %1705
        %v1707 = vsel %vm616, %v1619, 0.0
        %v1708 = vadd.f32 %v1638, %v1707
        %1709 = vadd.xlane.f32.xlu0 %v1708
        %v1710 = vpop.xlane.xlu0 %1709
        %v1711 = vsel %vm616, %v1623, 0.0
        %v1712 = vadd.f32 %v1639, %v1711
        %1713 = vadd.xlane.f32.xlu0 %v1712
        %v1714 = vpop.xlane.xlu0 %1713
        %v1715 = vsel %vm616, %v1627, 0.0
        %v1716 = vadd.f32 %v1640, %v1715
        %1717 = vadd.xlane.f32.xlu0 %v1716
        %v1718 = vpop.xlane.xlu0 %1717
        %v1719 = vmul.f32 %v1670, %v1133
        %v1720 = vmul.f32 %v1674, %v1133
        %v1721 = vmul.f32 %v1678, %v1133
        %v1722 = vmul.f32 %v1682, %v1133
        %v1723 = vmul.f32 %v1686, %v1133
        %v1724 = vmul.f32 %v1690, %v1133
        %v1725 = vmul.f32 %v1694, %v1133
        %v1726 = vmul.f32 %v1698, %v1133
        %v1727 = vmul.f32 %v1702, %v1133
        %v1728 = vmul.f32 %v1706, %v1133
        %v1729 = vmul.f32 %v1710, %v1133
        %v1730 = vmul.f32 %v1714, %v1133
        %v1731 = vmul.f32 %v1718, %v1133
        %v1732 = vadd.f32 %v1719, 1e-05
        %v1733 = vadd.f32 %v1720, 1e-05
        %v1734 = vadd.f32 %v1721, 1e-05
        %v1735 = vadd.f32 %v1722, 1e-05
        %v1736 = vadd.f32 %v1723, 1e-05
        %v1737 = vadd.f32 %v1724, 1e-05
        %v1738 = vadd.f32 %v1725, 1e-05
        %v1739 = vadd.f32 %v1726, 1e-05
        %v1740 = vadd.f32 %v1727, 1e-05
        %v1741 = vadd.f32 %v1728, 1e-05
        %v1742 = vadd.f32 %v1729, 1e-05
        %v1743 = vadd.f32 %v1730, 1e-05
        %v1744 = vadd.f32 %v1731, 1e-05
        %v1745 = vrsqrt.pop %v1732
        %v1746 = vrsqrt.pop %v1733
        %v1747 = vrsqrt.pop %v1734
        %v1748 = vrsqrt.pop %v1735
        %v1749 = vrsqrt.pop %v1736
        %v1750 = vrsqrt.pop %v1737
        %v1751 = vrsqrt.pop %v1738
        %v1752 = vrsqrt.pop %v1739
        %v1753 = vrsqrt.pop %v1740
        %v1754 = vrsqrt.pop %v1741
        %v1755 = vrsqrt.pop %v1742
        %v1756 = vrsqrt.pop %v1743
        %v1757 = vrsqrt.pop %v1744
        %v1758 = vmul.f32 %v1498, %v1745
        %v1759 = vmul.f32 %v1499, %v1745
        %v1760 = vmul.f32 %v1500, %v1746
        %v1761 = vmul.f32 %v1501, %v1746
        %v1762 = vmul.f32 %v1502, %v1747
        %v1763 = vmul.f32 %v1503, %v1747
        %v1764 = vmul.f32 %v1504, %v1748
        %v1765 = vmul.f32 %v1505, %v1748
        %v1766 = vmul.f32 %v1506, %v1749
        %v1767 = vmul.f32 %v1507, %v1749
        %v1768 = vmul.f32 %v1508, %v1750
        %v1769 = vmul.f32 %v1509, %v1750
        %v1770 = vmul.f32 %v1510, %v1751
        %v1771 = vmul.f32 %v1511, %v1751
        %v1772 = vmul.f32 %v1512, %v1752
        %v1773 = vmul.f32 %v1513, %v1752
        %v1774 = vmul.f32 %v1514, %v1753
        %v1775 = vmul.f32 %v1515, %v1753
        %v1776 = vmul.f32 %v1516, %v1754
        %v1777 = vmul.f32 %v1517, %v1754
        %v1778 = vmul.f32 %v1518, %v1755
        %v1779 = vmul.f32 %v1519, %v1755
        %v1780 = vmul.f32 %v1520, %v1756
        %v1781 = vmul.f32 %v1521, %v1756
        %v1782 = vmul.f32 %v1522, %v1757
        %v1783 = vmul.f32 %v1523, %v1757
        %1810 = vrot.lane.b32.xlu0 %v1758, 96
        %v1811 = vpop.permute.xlu0 %1810
        %1812 = vrot.lane.b32.xlu0 %v1759, 96
        %v1813 = vpop.permute.xlu0 %1812
        %1814 = vrot.lane.b32.xlu0 %v1760, 96
        %v1815 = vpop.permute.xlu0 %1814
        %1816 = vrot.lane.b32.xlu0 %v1761, 96
        %v1817 = vpop.permute.xlu0 %1816
        %1818 = vrot.lane.b32.xlu0 %v1762, 96
        %v1819 = vpop.permute.xlu0 %1818
        %1820 = vrot.lane.b32.xlu0 %v1763, 96
        %v1821 = vpop.permute.xlu0 %1820
        %1822 = vrot.lane.b32.xlu0 %v1764, 96
        %v1823 = vpop.permute.xlu0 %1822
        %1824 = vrot.lane.b32.xlu0 %v1765, 96
        %v1825 = vpop.permute.xlu0 %1824
        %1826 = vrot.lane.b32.xlu0 %v1766, 96
        %v1827 = vpop.permute.xlu0 %1826
        %1828 = vrot.lane.b32.xlu0 %v1767, 96
        %v1829 = vpop.permute.xlu0 %1828
        %1830 = vrot.lane.b32.xlu0 %v1768, 96
        %v1831 = vpop.permute.xlu0 %1830
        %1832 = vrot.lane.b32.xlu0 %v1769, 96
        %v1833 = vpop.permute.xlu0 %1832
        %1834 = vrot.lane.b32.xlu0 %v1770, 96
        %v1835 = vpop.permute.xlu0 %1834
        %1836 = vrot.lane.b32.xlu0 %v1771, 96
        %v1837 = vpop.permute.xlu0 %1836
        %1838 = vrot.lane.b32.xlu0 %v1772, 96
        %v1839 = vpop.permute.xlu0 %1838
        %1840 = vrot.lane.b32.xlu0 %v1773, 96
        %v1841 = vpop.permute.xlu0 %1840
        %1842 = vrot.lane.b32.xlu0 %v1774, 96
        %v1843 = vpop.permute.xlu0 %1842
        %1844 = vrot.lane.b32.xlu0 %v1775, 96
        %v1845 = vpop.permute.xlu0 %1844
        %1846 = vrot.lane.b32.xlu0 %v1776, 96
        %v1847 = vpop.permute.xlu0 %1846
        %1848 = vrot.lane.b32.xlu0 %v1777, 96
        %v1849 = vpop.permute.xlu0 %1848
        %1850 = vrot.lane.b32.xlu0 %v1778, 96
        %v1851 = vpop.permute.xlu0 %1850
        %1852 = vrot.lane.b32.xlu0 %v1779, 96
        %v1853 = vpop.permute.xlu0 %1852
        %1854 = vrot.lane.b32.xlu0 %v1780, 96
        %v1855 = vpop.permute.xlu0 %1854
        %1856 = vrot.lane.b32.xlu0 %v1781, 96
        %v1857 = vpop.permute.xlu0 %1856
        %1858 = vrot.lane.b32.xlu0 %v1782, 96
        %v1859 = vpop.permute.xlu0 %1858
        %1860 = vrot.lane.b32.xlu0 %v1783, 96
        %v1861 = vpop.permute.xlu0 %1860
        %v1862 = vsel %vm644, %v1811, %v1813
        %v1863 = vsel %vm644, %v1815, %v1817
        %v1864 = vsel %vm644, %v1819, %v1821
        %v1865 = vsel %vm644, %v1823, %v1825
        %v1866 = vsel %vm644, %v1827, %v1829
        %v1867 = vsel %vm644, %v1831, %v1833
        %v1868 = vsel %vm644, %v1835, %v1837
        %v1869 = vsel %vm644, %v1839, %v1841
        %v1870 = vsel %vm644, %v1843, %v1845
        %v1871 = vsel %vm644, %v1847, %v1849
        %v1872 = vsel %vm644, %v1851, %v1853
        %v1873 = vsel %vm644, %v1855, %v1857
        %v1874 = vsel %vm644, %v1859, %v1861
        %v1901 = vadd.f32 %v1290, %v1862
        %v1902 = vadd.f32 %v1291, %v1813
        %v1903 = vadd.f32 %v1292, %v1863
        %v1904 = vadd.f32 %v1293, %v1817
        %v1905 = vadd.f32 %v1294, %v1864
        %v1906 = vadd.f32 %v1295, %v1821
        %v1907 = vadd.f32 %v1296, %v1865
        %v1908 = vadd.f32 %v1297, %v1825
        %v1909 = vadd.f32 %v1298, %v1866
        %v1910 = vadd.f32 %v1299, %v1829
        %v1911 = vadd.f32 %v1300, %v1867
        %v1912 = vadd.f32 %v1301, %v1833
        %v1913 = vadd.f32 %v1302, %v1868
        %v1914 = vadd.f32 %v1303, %v1837
        %v1915 = vadd.f32 %v1304, %v1869
        %v1916 = vadd.f32 %v1305, %v1841
        %v1917 = vadd.f32 %v1306, %v1870
        %v1918 = vadd.f32 %v1307, %v1845
        %v1919 = vadd.f32 %v1308, %v1871
        %v1920 = vadd.f32 %v1309, %v1849
        %v1921 = vadd.f32 %v1310, %v1872
        %v1922 = vadd.f32 %v1311, %v1853
        %v1923 = vadd.f32 %v1312, %v1873
        %v1924 = vadd.f32 %v1313, %v1857
        %v1925 = vadd.f32 %v1314, %v1874
        %v1926 = vadd.f32 %v1315, %v1861
        %1940 = vrot.lane.b32.xlu0 %v1015, 64
        %v1941 = vpop.permute.xlu0 %1940
        %1942 = vrot.lane.b32.xlu0 %v1017, 64
        %v1943 = vpop.permute.xlu0 %1942
        %1944 = vrot.lane.b32.xlu0 %v1019, 64
        %v1945 = vpop.permute.xlu0 %1944
        %1946 = vrot.lane.b32.xlu0 %v1021, 64
        %v1947 = vpop.permute.xlu0 %1946
        %1948 = vrot.lane.b32.xlu0 %v1025, 64
        %v1949 = vpop.permute.xlu0 %1948
        %1950 = vrot.lane.b32.xlu0 %v1027, 64
        %v1951 = vpop.permute.xlu0 %1950
        %1952 = vrot.lane.b32.xlu0 %v1029, 64
        %v1953 = vpop.permute.xlu0 %1952
        %1954 = vrot.lane.b32.xlu0 %v1031, 64
        %v1955 = vpop.permute.xlu0 %1954
        %1956 = vrot.lane.b32.xlu0 %v1035, 64
        %v1957 = vpop.permute.xlu0 %1956
        %1958 = vrot.lane.b32.xlu0 %v1037, 64
        %v1959 = vpop.permute.xlu0 %1958
        %1960 = vrot.lane.b32.xlu0 %v1039, 64
        %v1961 = vpop.permute.xlu0 %1960
        %1962 = vrot.lane.b32.xlu0 %v1041, 64
        %v1963 = vpop.permute.xlu0 %1962
        %1964 = vrot.lane.b32.xlu0 %v1045, 64
        %v1965 = vpop.permute.xlu0 %1964
        %1966 = vrot.lane.b32.xlu0 %v1047, 64
        %v1967 = vpop.permute.xlu0 %1966
        %1968 = vrot.lane.b32.xlu0 %v1049, 64
        %v1969 = vpop.permute.xlu0 %1968
        %1970 = vrot.lane.b32.xlu0 %v1051, 64
        %v1971 = vpop.permute.xlu0 %1970
        %1972 = vrot.lane.b32.xlu0 %v1055, 64
        %v1973 = vpop.permute.xlu0 %1972
        %1974 = vrot.lane.b32.xlu0 %v1057, 64
        %v1975 = vpop.permute.xlu0 %1974
        %1976 = vrot.lane.b32.xlu0 %v1059, 64
        %v1977 = vpop.permute.xlu0 %1976
        %1978 = vrot.lane.b32.xlu0 %v1061, 64
        %v1979 = vpop.permute.xlu0 %1978
        %1980 = vrot.lane.b32.xlu0 %v1065, 64
        %v1981 = vpop.permute.xlu0 %1980
        %1982 = vrot.lane.b32.xlu0 %v1067, 64
        %v1983 = vpop.permute.xlu0 %1982
        %1984 = vrot.lane.b32.xlu0 %v1069, 64
        %v1985 = vpop.permute.xlu0 %1984
        %1986 = vrot.lane.b32.xlu0 %v1071, 64
        %v1987 = vpop.permute.xlu0 %1986
        %1988 = vrot.lane.b32.xlu0 %v1075, 64
        %v1989 = vpop.permute.xlu0 %1988
        %1990 = vrot.lane.b32.xlu0 %v1077, 64
        %v1991 = vpop.permute.xlu0 %1990
        %v1992 = vsel %vm630, %v1941, %v1943
        %v1993 = vsel %vm630, %v1945, %v1947
        %v1994 = vsel %vm630, %v1949, %v1951
        %v1995 = vsel %vm630, %v1953, %v1955
        %v1996 = vsel %vm630, %v1957, %v1959
        %v1997 = vsel %vm630, %v1961, %v1963
        %v1998 = vsel %vm630, %v1965, %v1967
        %v1999 = vsel %vm630, %v1969, %v1971
        %v2000 = vsel %vm630, %v1973, %v1975
        %v2001 = vsel %vm630, %v1977, %v1979
        %v2002 = vsel %vm630, %v1981, %v1983
        %v2003 = vsel %vm630, %v1985, %v1987
        %v2004 = vsel %vm630, %v1989, %v1991
        %v2031 = vsel %vm616, %v1943, 0.0
        %v2032 = vadd.f32 %v1992, %v2031
        %2033 = vadd.xlane.f32.xlu0 %v2032
        %v2034 = vpop.xlane.xlu0 %2033
        %v2035 = vsel %vm616, %v1947, 0.0
        %v2036 = vadd.f32 %v1993, %v2035
        %2037 = vadd.xlane.f32.xlu0 %v2036
        %v2038 = vpop.xlane.xlu0 %2037
        %v2039 = vsel %vm616, %v1951, 0.0
        %v2040 = vadd.f32 %v1994, %v2039
        %2041 = vadd.xlane.f32.xlu0 %v2040
        %v2042 = vpop.xlane.xlu0 %2041
        %v2043 = vsel %vm616, %v1955, 0.0
        %v2044 = vadd.f32 %v1995, %v2043
        %2045 = vadd.xlane.f32.xlu0 %v2044
        %v2046 = vpop.xlane.xlu0 %2045
        %v2047 = vsel %vm616, %v1959, 0.0
        %v2048 = vadd.f32 %v1996, %v2047
        %2049 = vadd.xlane.f32.xlu0 %v2048
        %v2050 = vpop.xlane.xlu0 %2049
        %v2051 = vsel %vm616, %v1963, 0.0
        %v2052 = vadd.f32 %v1997, %v2051
        %2053 = vadd.xlane.f32.xlu0 %v2052
        %v2054 = vpop.xlane.xlu0 %2053
        %v2055 = vsel %vm616, %v1967, 0.0
        %v2056 = vadd.f32 %v1998, %v2055
        %2057 = vadd.xlane.f32.xlu0 %v2056
        %v2058 = vpop.xlane.xlu0 %2057
        %v2059 = vsel %vm616, %v1971, 0.0
        %v2060 = vadd.f32 %v1999, %v2059
        %2061 = vadd.xlane.f32.xlu0 %v2060
        %v2062 = vpop.xlane.xlu0 %2061
        %v2063 = vsel %vm616, %v1975, 0.0
        %v2064 = vadd.f32 %v2000, %v2063
        %2065 = vadd.xlane.f32.xlu0 %v2064
        %v2066 = vpop.xlane.xlu0 %2065
        %v2067 = vsel %vm616, %v1979, 0.0
        %v2068 = vadd.f32 %v2001, %v2067
        %2069 = vadd.xlane.f32.xlu0 %v2068
        %v2070 = vpop.xlane.xlu0 %2069
        %v2071 = vsel %vm616, %v1983, 0.0
        %v2072 = vadd.f32 %v2002, %v2071
        %2073 = vadd.xlane.f32.xlu0 %v2072
        %v2074 = vpop.xlane.xlu0 %2073
        %v2075 = vsel %vm616, %v1987, 0.0
        %v2076 = vadd.f32 %v2003, %v2075
        %2077 = vadd.xlane.f32.xlu0 %v2076
        %v2078 = vpop.xlane.xlu0 %2077
        %v2079 = vsel %vm616, %v1991, 0.0
        %v2080 = vadd.f32 %v2004, %v2079
        %2081 = vadd.xlane.f32.xlu0 %v2080
        %v2082 = vpop.xlane.xlu0 %2081
        %v2083 = vmul.f32 %v2034, %v1133
        %v2084 = vmul.f32 %v2038, %v1133
        %v2085 = vmul.f32 %v2042, %v1133
        %v2086 = vmul.f32 %v2046, %v1133
        %v2087 = vmul.f32 %v2050, %v1133
        %v2088 = vmul.f32 %v2054, %v1133
        %v2089 = vmul.f32 %v2058, %v1133
        %v2090 = vmul.f32 %v2062, %v1133
        %v2091 = vmul.f32 %v2066, %v1133
        %v2092 = vmul.f32 %v2070, %v1133
        %v2093 = vmul.f32 %v2074, %v1133
        %v2094 = vmul.f32 %v2078, %v1133
        %v2095 = vmul.f32 %v2082, %v1133
        %v2096 = vsub.f32 %v1015, %v2083
        %v2097 = vsub.f32 %v1017, %v2083
        %v2098 = vsub.f32 %v1019, %v2084
        %v2099 = vsub.f32 %v1021, %v2084
        %v2100 = vsub.f32 %v1025, %v2085
        %v2101 = vsub.f32 %v1027, %v2085
        %v2102 = vsub.f32 %v1029, %v2086
        %v2103 = vsub.f32 %v1031, %v2086
        %v2104 = vsub.f32 %v1035, %v2087
        %v2105 = vsub.f32 %v1037, %v2087
        %v2106 = vsub.f32 %v1039, %v2088
        %v2107 = vsub.f32 %v1041, %v2088
        %v2108 = vsub.f32 %v1045, %v2089
        %v2109 = vsub.f32 %v1047, %v2089
        %v2110 = vsub.f32 %v1049, %v2090
        %v2111 = vsub.f32 %v1051, %v2090
        %v2112 = vsub.f32 %v1055, %v2091
        %v2113 = vsub.f32 %v1057, %v2091
        %v2114 = vsub.f32 %v1059, %v2092
        %v2115 = vsub.f32 %v1061, %v2092
        %v2116 = vsub.f32 %v1065, %v2093
        %v2117 = vsub.f32 %v1067, %v2093
        %v2118 = vsub.f32 %v1069, %v2094
        %v2119 = vsub.f32 %v1071, %v2094
        %v2120 = vsub.f32 %v1075, %v2095
        %v2121 = vsub.f32 %v1077, %v2095
        %v2122 = vmul.f32 %v2096, %v2096
        %v2123 = vmul.f32 %v2097, %v2097
        %v2124 = vmul.f32 %v2098, %v2098
        %v2125 = vmul.f32 %v2099, %v2099
        %v2126 = vmul.f32 %v2100, %v2100
        %v2127 = vmul.f32 %v2101, %v2101
        %v2128 = vmul.f32 %v2102, %v2102
        %v2129 = vmul.f32 %v2103, %v2103
        %v2130 = vmul.f32 %v2104, %v2104
        %v2131 = vmul.f32 %v2105, %v2105
        %v2132 = vmul.f32 %v2106, %v2106
        %v2133 = vmul.f32 %v2107, %v2107
        %v2134 = vmul.f32 %v2108, %v2108
        %v2135 = vmul.f32 %v2109, %v2109
        %v2136 = vmul.f32 %v2110, %v2110
        %v2137 = vmul.f32 %v2111, %v2111
        %v2138 = vmul.f32 %v2112, %v2112
        %v2139 = vmul.f32 %v2113, %v2113
        %v2140 = vmul.f32 %v2114, %v2114
        %v2141 = vmul.f32 %v2115, %v2115
        %v2142 = vmul.f32 %v2116, %v2116
        %v2143 = vmul.f32 %v2117, %v2117
        %v2144 = vmul.f32 %v2118, %v2118
        %v2145 = vmul.f32 %v2119, %v2119
        %v2146 = vmul.f32 %v2120, %v2120
        %v2147 = vmul.f32 %v2121, %v2121
        %2174 = vrot.lane.b32.xlu0 %v2122, 64
        %v2175 = vpop.permute.xlu0 %2174
        %2176 = vrot.lane.b32.xlu0 %v2123, 64
        %v2177 = vpop.permute.xlu0 %2176
        %2178 = vrot.lane.b32.xlu0 %v2124, 64
        %v2179 = vpop.permute.xlu0 %2178
        %2180 = vrot.lane.b32.xlu0 %v2125, 64
        %v2181 = vpop.permute.xlu0 %2180
        %2182 = vrot.lane.b32.xlu0 %v2126, 64
        %v2183 = vpop.permute.xlu0 %2182
        %2184 = vrot.lane.b32.xlu0 %v2127, 64
        %v2185 = vpop.permute.xlu0 %2184
        %2186 = vrot.lane.b32.xlu0 %v2128, 64
        %v2187 = vpop.permute.xlu0 %2186
        %2188 = vrot.lane.b32.xlu0 %v2129, 64
        %v2189 = vpop.permute.xlu0 %2188
        %2190 = vrot.lane.b32.xlu0 %v2130, 64
        %v2191 = vpop.permute.xlu0 %2190
        %2192 = vrot.lane.b32.xlu0 %v2131, 64
        %v2193 = vpop.permute.xlu0 %2192
        %2194 = vrot.lane.b32.xlu0 %v2132, 64
        %v2195 = vpop.permute.xlu0 %2194
        %2196 = vrot.lane.b32.xlu0 %v2133, 64
        %v2197 = vpop.permute.xlu0 %2196
        %2198 = vrot.lane.b32.xlu0 %v2134, 64
        %v2199 = vpop.permute.xlu0 %2198
        %2200 = vrot.lane.b32.xlu0 %v2135, 64
        %v2201 = vpop.permute.xlu0 %2200
        %2202 = vrot.lane.b32.xlu0 %v2136, 64
        %v2203 = vpop.permute.xlu0 %2202
        %2204 = vrot.lane.b32.xlu0 %v2137, 64
        %v2205 = vpop.permute.xlu0 %2204
        %2206 = vrot.lane.b32.xlu0 %v2138, 64
        %v2207 = vpop.permute.xlu0 %2206
        %2208 = vrot.lane.b32.xlu0 %v2139, 64
        %v2209 = vpop.permute.xlu0 %2208
        %2210 = vrot.lane.b32.xlu0 %v2140, 64
        %v2211 = vpop.permute.xlu0 %2210
        %2212 = vrot.lane.b32.xlu0 %v2141, 64
        %v2213 = vpop.permute.xlu0 %2212
        %2214 = vrot.lane.b32.xlu0 %v2142, 64
        %v2215 = vpop.permute.xlu0 %2214
        %2216 = vrot.lane.b32.xlu0 %v2143, 64
        %v2217 = vpop.permute.xlu0 %2216
        %2218 = vrot.lane.b32.xlu0 %v2144, 64
        %v2219 = vpop.permute.xlu0 %2218
        %2220 = vrot.lane.b32.xlu0 %v2145, 64
        %v2221 = vpop.permute.xlu0 %2220
        %2222 = vrot.lane.b32.xlu0 %v2146, 64
        %v2223 = vpop.permute.xlu0 %2222
        %2224 = vrot.lane.b32.xlu0 %v2147, 64
        %v2225 = vpop.permute.xlu0 %2224
        %v2226 = vsel %vm630, %v2175, %v2177
        %v2227 = vsel %vm630, %v2179, %v2181
        %v2228 = vsel %vm630, %v2183, %v2185
        %v2229 = vsel %vm630, %v2187, %v2189
        %v2230 = vsel %vm630, %v2191, %v2193
        %v2231 = vsel %vm630, %v2195, %v2197
        %v2232 = vsel %vm630, %v2199, %v2201
        %v2233 = vsel %vm630, %v2203, %v2205
        %v2234 = vsel %vm630, %v2207, %v2209
        %v2235 = vsel %vm630, %v2211, %v2213
        %v2236 = vsel %vm630, %v2215, %v2217
        %v2237 = vsel %vm630, %v2219, %v2221
        %v2238 = vsel %vm630, %v2223, %v2225
        %v2265 = vsel %vm616, %v2177, 0.0
        %v2266 = vadd.f32 %v2226, %v2265
        %2267 = vadd.xlane.f32.xlu0 %v2266
        %v2268 = vpop.xlane.xlu0 %2267
        %v2269 = vsel %vm616, %v2181, 0.0
        %v2270 = vadd.f32 %v2227, %v2269
        %2271 = vadd.xlane.f32.xlu0 %v2270
        %v2272 = vpop.xlane.xlu0 %2271
        %v2273 = vsel %vm616, %v2185, 0.0
        %v2274 = vadd.f32 %v2228, %v2273
        %2275 = vadd.xlane.f32.xlu0 %v2274
        %v2276 = vpop.xlane.xlu0 %2275
        %v2277 = vsel %vm616, %v2189, 0.0
        %v2278 = vadd.f32 %v2229, %v2277
        %2279 = vadd.xlane.f32.xlu0 %v2278
        %v2280 = vpop.xlane.xlu0 %2279
        %v2281 = vsel %vm616, %v2193, 0.0
        %v2282 = vadd.f32 %v2230, %v2281
        %2283 = vadd.xlane.f32.xlu0 %v2282
        %v2284 = vpop.xlane.xlu0 %2283
        %v2285 = vsel %vm616, %v2197, 0.0
        %v2286 = vadd.f32 %v2231, %v2285
        %2287 = vadd.xlane.f32.xlu0 %v2286
        %v2288 = vpop.xlane.xlu0 %2287
        %v2289 = vsel %vm616, %v2201, 0.0
        %v2290 = vadd.f32 %v2232, %v2289
        %2291 = vadd.xlane.f32.xlu0 %v2290
        %v2292 = vpop.xlane.xlu0 %2291
        %v2293 = vsel %vm616, %v2205, 0.0
        %v2294 = vadd.f32 %v2233, %v2293
        %2295 = vadd.xlane.f32.xlu0 %v2294
        %v2296 = vpop.xlane.xlu0 %2295
        %v2297 = vsel %vm616, %v2209, 0.0
        %v2298 = vadd.f32 %v2234, %v2297
        %2299 = vadd.xlane.f32.xlu0 %v2298
        %v2300 = vpop.xlane.xlu0 %2299
        %v2301 = vsel %vm616, %v2213, 0.0
        %v2302 = vadd.f32 %v2235, %v2301
        %2303 = vadd.xlane.f32.xlu0 %v2302
        %v2304 = vpop.xlane.xlu0 %2303
        %v2305 = vsel %vm616, %v2217, 0.0
        %v2306 = vadd.f32 %v2236, %v2305
        %2307 = vadd.xlane.f32.xlu0 %v2306
        %v2308 = vpop.xlane.xlu0 %2307
        %v2309 = vsel %vm616, %v2221, 0.0
        %v2310 = vadd.f32 %v2237, %v2309
        %2311 = vadd.xlane.f32.xlu0 %v2310
        %v2312 = vpop.xlane.xlu0 %2311
        %v2313 = vsel %vm616, %v2225, 0.0
        %v2314 = vadd.f32 %v2238, %v2313
        %2315 = vadd.xlane.f32.xlu0 %v2314
        %v2316 = vpop.xlane.xlu0 %2315
        %v2317 = vmul.f32 %v2268, %v1133
        %v2318 = vmul.f32 %v2272, %v1133
        %v2319 = vmul.f32 %v2276, %v1133
        %v2320 = vmul.f32 %v2280, %v1133
        %v2321 = vmul.f32 %v2284, %v1133
        %v2322 = vmul.f32 %v2288, %v1133
        %v2323 = vmul.f32 %v2292, %v1133
        %v2324 = vmul.f32 %v2296, %v1133
        %v2325 = vmul.f32 %v2300, %v1133
        %v2326 = vmul.f32 %v2304, %v1133
        %v2327 = vmul.f32 %v2308, %v1133
        %v2328 = vmul.f32 %v2312, %v1133
        %v2329 = vmul.f32 %v2316, %v1133
        %v2330 = vadd.f32 %v2317, 1e-05
        %v2331 = vadd.f32 %v2318, 1e-05
        %v2332 = vadd.f32 %v2319, 1e-05
        %v2333 = vadd.f32 %v2320, 1e-05
        %v2334 = vadd.f32 %v2321, 1e-05
        %v2335 = vadd.f32 %v2322, 1e-05
        %v2336 = vadd.f32 %v2323, 1e-05
        %v2337 = vadd.f32 %v2324, 1e-05
        %v2338 = vadd.f32 %v2325, 1e-05
        %v2339 = vadd.f32 %v2326, 1e-05
        %v2340 = vadd.f32 %v2327, 1e-05
        %v2341 = vadd.f32 %v2328, 1e-05
        %v2342 = vadd.f32 %v2329, 1e-05
        %v2343 = vrsqrt.pop %v2330
        %v2344 = vrsqrt.pop %v2331
        %v2345 = vrsqrt.pop %v2332
        %v2346 = vrsqrt.pop %v2333
        %v2347 = vrsqrt.pop %v2334
        %v2348 = vrsqrt.pop %v2335
        %v2349 = vrsqrt.pop %v2336
        %v2350 = vrsqrt.pop %v2337
        %v2351 = vrsqrt.pop %v2338
        %v2352 = vrsqrt.pop %v2339
        %v2353 = vrsqrt.pop %v2340
        %v2354 = vrsqrt.pop %v2341
        %v2355 = vrsqrt.pop %v2342
        %v2356 = vmul.f32 %v2096, %v2343
        %v2357 = vmul.f32 %v2097, %v2343
        %v2358 = vmul.f32 %v2098, %v2344
        %v2359 = vmul.f32 %v2099, %v2344
        %v2360 = vmul.f32 %v2100, %v2345
        %v2361 = vmul.f32 %v2101, %v2345
        %v2362 = vmul.f32 %v2102, %v2346
        %v2363 = vmul.f32 %v2103, %v2346
        %v2364 = vmul.f32 %v2104, %v2347
        %v2365 = vmul.f32 %v2105, %v2347
        %v2366 = vmul.f32 %v2106, %v2348
        %v2367 = vmul.f32 %v2107, %v2348
        %v2368 = vmul.f32 %v2108, %v2349
        %v2369 = vmul.f32 %v2109, %v2349
        %v2370 = vmul.f32 %v2110, %v2350
        %v2371 = vmul.f32 %v2111, %v2350
        %v2372 = vmul.f32 %v2112, %v2351
        %v2373 = vmul.f32 %v2113, %v2351
        %v2374 = vmul.f32 %v2114, %v2352
        %v2375 = vmul.f32 %v2115, %v2352
        %v2376 = vmul.f32 %v2116, %v2353
        %v2377 = vmul.f32 %v2117, %v2353
        %v2378 = vmul.f32 %v2118, %v2354
        %v2379 = vmul.f32 %v2119, %v2354
        %v2380 = vmul.f32 %v2120, %v2355
        %v2381 = vmul.f32 %v2121, %v2355
        %2408 = vrot.lane.b32.xlu0 %v2356, 64
        %v2409 = vpop.permute.xlu0 %2408
        %2410 = vrot.lane.b32.xlu0 %v2357, 64
        %v2411 = vpop.permute.xlu0 %2410
        %2412 = vrot.lane.b32.xlu0 %v2358, 64
        %v2413 = vpop.permute.xlu0 %2412
        %2414 = vrot.lane.b32.xlu0 %v2359, 64
        %v2415 = vpop.permute.xlu0 %2414
        %2416 = vrot.lane.b32.xlu0 %v2360, 64
        %v2417 = vpop.permute.xlu0 %2416
        %2418 = vrot.lane.b32.xlu0 %v2361, 64
        %v2419 = vpop.permute.xlu0 %2418
        %2420 = vrot.lane.b32.xlu0 %v2362, 64
        %v2421 = vpop.permute.xlu0 %2420
        %2422 = vrot.lane.b32.xlu0 %v2363, 64
        %v2423 = vpop.permute.xlu0 %2422
        %2424 = vrot.lane.b32.xlu0 %v2364, 64
        %v2425 = vpop.permute.xlu0 %2424
        %2426 = vrot.lane.b32.xlu0 %v2365, 64
        %v2427 = vpop.permute.xlu0 %2426
        %2428 = vrot.lane.b32.xlu0 %v2366, 64
        %v2429 = vpop.permute.xlu0 %2428
        %2430 = vrot.lane.b32.xlu0 %v2367, 64
        %v2431 = vpop.permute.xlu0 %2430
        %2432 = vrot.lane.b32.xlu0 %v2368, 64
        %v2433 = vpop.permute.xlu0 %2432
        %2434 = vrot.lane.b32.xlu0 %v2369, 64
        %v2435 = vpop.permute.xlu0 %2434
        %2436 = vrot.lane.b32.xlu0 %v2370, 64
        %v2437 = vpop.permute.xlu0 %2436
        %2438 = vrot.lane.b32.xlu0 %v2371, 64
        %v2439 = vpop.permute.xlu0 %2438
        %2440 = vrot.lane.b32.xlu0 %v2372, 64
        %v2441 = vpop.permute.xlu0 %2440
        %2442 = vrot.lane.b32.xlu0 %v2373, 64
        %v2443 = vpop.permute.xlu0 %2442
        %2444 = vrot.lane.b32.xlu0 %v2374, 64
        %v2445 = vpop.permute.xlu0 %2444
        %2446 = vrot.lane.b32.xlu0 %v2375, 64
        %v2447 = vpop.permute.xlu0 %2446
        %2448 = vrot.lane.b32.xlu0 %v2376, 64
        %v2449 = vpop.permute.xlu0 %2448
        %2450 = vrot.lane.b32.xlu0 %v2377, 64
        %v2451 = vpop.permute.xlu0 %2450
        %2452 = vrot.lane.b32.xlu0 %v2378, 64
        %v2453 = vpop.permute.xlu0 %2452
        %2454 = vrot.lane.b32.xlu0 %v2379, 64
        %v2455 = vpop.permute.xlu0 %2454
        %2456 = vrot.lane.b32.xlu0 %v2380, 64
        %v2457 = vpop.permute.xlu0 %2456
        %2458 = vrot.lane.b32.xlu0 %v2381, 64
        %v2459 = vpop.permute.xlu0 %2458
        %v2460 = vsel %vm630, %v2409, %v2411
        %v2461 = vsel %vm630, %v2413, %v2415
        %v2462 = vsel %vm630, %v2417, %v2419
        %v2463 = vsel %vm630, %v2421, %v2423
        %v2464 = vsel %vm630, %v2425, %v2427
        %v2465 = vsel %vm630, %v2429, %v2431
        %v2466 = vsel %vm630, %v2433, %v2435
        %v2467 = vsel %vm630, %v2437, %v2439
        %v2468 = vsel %vm630, %v2441, %v2443
        %v2469 = vsel %vm630, %v2445, %v2447
        %v2470 = vsel %vm630, %v2449, %v2451
        %v2471 = vsel %vm630, %v2453, %v2455
        %v2472 = vsel %vm630, %v2457, %v2459
        %v2499 = vadd.f32 %v1901, %v2460
        %v2500 = vadd.f32 %v1902, %v2411
        %v2501 = vadd.f32 %v1903, %v2461
        %v2502 = vadd.f32 %v1904, %v2415
        %v2503 = vadd.f32 %v1905, %v2462
        %v2504 = vadd.f32 %v1906, %v2419
        %v2505 = vadd.f32 %v1907, %v2463
        %v2506 = vadd.f32 %v1908, %v2423
        %v2507 = vadd.f32 %v1909, %v2464
        %v2508 = vadd.f32 %v1910, %v2427
        %v2509 = vadd.f32 %v1911, %v2465
        %v2510 = vadd.f32 %v1912, %v2431
        %v2511 = vadd.f32 %v1913, %v2466
        %v2512 = vadd.f32 %v1914, %v2435
        %v2513 = vadd.f32 %v1915, %v2467
        %v2514 = vadd.f32 %v1916, %v2439
        %v2515 = vadd.f32 %v1917, %v2468
        %v2516 = vadd.f32 %v1918, %v2443
        %v2517 = vadd.f32 %v1919, %v2469
        %v2518 = vadd.f32 %v1920, %v2447
        %v2519 = vadd.f32 %v1921, %v2470
        %v2520 = vadd.f32 %v1922, %v2451
        %v2521 = vadd.f32 %v1923, %v2471
        %v2522 = vadd.f32 %v1924, %v2455
        %v2523 = vadd.f32 %v1925, %v2472
        %v2524 = vadd.f32 %v1926, %v2459
        %v2525 = vxor.u32 %v2499, 2147483648
        %v2526 = vxor.u32 %v2500, 2147483648
        %v2527 = vxor.u32 %v2501, 2147483648
        %v2528 = vxor.u32 %v2502, 2147483648
        %v2529 = vxor.u32 %v2503, 2147483648
        %v2530 = vxor.u32 %v2504, 2147483648
        %v2531 = vxor.u32 %v2505, 2147483648
        %v2532 = vxor.u32 %v2506, 2147483648
        %v2533 = vxor.u32 %v2507, 2147483648
        %v2534 = vxor.u32 %v2508, 2147483648
        %v2535 = vxor.u32 %v2509, 2147483648
        %v2536 = vxor.u32 %v2510, 2147483648
        %v2537 = vxor.u32 %v2511, 2147483648
        %v2538 = vxor.u32 %v2512, 2147483648
        %v2539 = vxor.u32 %v2513, 2147483648
        %v2540 = vxor.u32 %v2514, 2147483648
        %v2541 = vxor.u32 %v2515, 2147483648
        %v2542 = vxor.u32 %v2516, 2147483648
        %v2543 = vxor.u32 %v2517, 2147483648
        %v2544 = vxor.u32 %v2518, 2147483648
        %v2545 = vxor.u32 %v2519, 2147483648
        %v2546 = vxor.u32 %v2520, 2147483648
        %v2547 = vxor.u32 %v2521, 2147483648
        %v2548 = vxor.u32 %v2522, 2147483648
        %v2549 = vxor.u32 %v2523, 2147483648
        %v2550 = vxor.u32 %v2524, 2147483648
        %v2551 = vmul.f32 %v2525, 1.442695
        %v2552 = vpow.pop %v2551
        %v2553 = vmul.f32 %v2526, 1.442695
        %v2554 = vpow.pop %v2553
        %v2555 = vmul.f32 %v2527, 1.442695
        %v2556 = vpow.pop %v2555
        %v2557 = vmul.f32 %v2528, 1.442695
        %v2558 = vpow.pop %v2557
        %v2559 = vmul.f32 %v2529, 1.442695
        %v2560 = vpow.pop %v2559
        %v2561 = vmul.f32 %v2530, 1.442695
        %v2562 = vpow.pop %v2561
        %v2563 = vmul.f32 %v2531, 1.442695
        %v2564 = vpow.pop %v2563
        %v2565 = vmul.f32 %v2532, 1.442695
        %v2566 = vpow.pop %v2565
        %v2567 = vmul.f32 %v2533, 1.442695
        %v2568 = vpow.pop %v2567
        %v2569 = vmul.f32 %v2534, 1.442695
        %v2570 = vpow.pop %v2569
        %v2571 = vmul.f32 %v2535, 1.442695
        %v2572 = vpow.pop %v2571
        %v2573 = vmul.f32 %v2536, 1.442695
        %v2574 = vpow.pop %v2573
        %v2575 = vmul.f32 %v2537, 1.442695
        %v2576 = vpow.pop %v2575
        %v2577 = vmul.f32 %v2538, 1.442695
        %v2578 = vpow.pop %v2577
        %v2579 = vmul.f32 %v2539, 1.442695
        %v2580 = vpow.pop %v2579
        %v2581 = vmul.f32 %v2540, 1.442695
        %v2582 = vpow.pop %v2581
        %v2583 = vmul.f32 %v2541, 1.442695
        %v2584 = vpow.pop %v2583
        %v2585 = vmul.f32 %v2542, 1.442695
        %v2586 = vpow.pop %v2585
        %v2587 = vmul.f32 %v2543, 1.442695
        %v2588 = vpow.pop %v2587
        %v2589 = vmul.f32 %v2544, 1.442695
        %v2590 = vpow.pop %v2589
        %v2591 = vmul.f32 %v2545, 1.442695
        %v2592 = vpow.pop %v2591
        %v2593 = vmul.f32 %v2546, 1.442695
        %v2594 = vpow.pop %v2593
        %v2595 = vmul.f32 %v2547, 1.442695
        %v2596 = vpow.pop %v2595
        %v2597 = vmul.f32 %v2548, 1.442695
        %v2598 = vpow.pop %v2597
        %v2599 = vmul.f32 %v2549, 1.442695
        %v2600 = vpow.pop %v2599
        %v2601 = vmul.f32 %v2550, 1.442695
        %v2602 = vpow.pop %v2601
        %v2603 = vadd.f32 %v2552, 1.0
        %v2604 = vadd.f32 %v2554, 1.0
        %v2605 = vadd.f32 %v2556, 1.0
        %v2606 = vadd.f32 %v2558, 1.0
        %v2607 = vadd.f32 %v2560, 1.0
        %v2608 = vadd.f32 %v2562, 1.0
        %v2609 = vadd.f32 %v2564, 1.0
        %v2610 = vadd.f32 %v2566, 1.0
        %v2611 = vadd.f32 %v2568, 1.0
        %v2612 = vadd.f32 %v2570, 1.0
        %v2613 = vadd.f32 %v2572, 1.0
        %v2614 = vadd.f32 %v2574, 1.0
        %v2615 = vadd.f32 %v2576, 1.0
        %v2616 = vadd.f32 %v2578, 1.0
        %v2617 = vadd.f32 %v2580, 1.0
        %v2618 = vadd.f32 %v2582, 1.0
        %v2619 = vadd.f32 %v2584, 1.0
        %v2620 = vadd.f32 %v2586, 1.0
        %v2621 = vadd.f32 %v2588, 1.0
        %v2622 = vadd.f32 %v2590, 1.0
        %v2623 = vadd.f32 %v2592, 1.0
        %v2624 = vadd.f32 %v2594, 1.0
        %v2625 = vadd.f32 %v2596, 1.0
        %v2626 = vadd.f32 %v2598, 1.0
        %v2627 = vadd.f32 %v2600, 1.0
        %v2628 = vadd.f32 %v2602, 1.0
        %v2629 = vrcp.pop %v2603
        %v2630 = vmul.f32 1.0, %v2629
        %v2631 = vrcp.pop %v2604
        %v2632 = vmul.f32 1.0, %v2631
        %v2633 = vrcp.pop %v2605
        %v2634 = vmul.f32 1.0, %v2633
        %v2635 = vrcp.pop %v2606
        %v2636 = vmul.f32 1.0, %v2635
        %v2637 = vrcp.pop %v2607
        %v2638 = vmul.f32 1.0, %v2637
        %v2639 = vrcp.pop %v2608
        %v2640 = vmul.f32 1.0, %v2639
        %v2641 = vrcp.pop %v2609
        %v2642 = vmul.f32 1.0, %v2641
        %v2643 = vrcp.pop %v2610
        %v2644 = vmul.f32 1.0, %v2643
        %v2645 = vrcp.pop %v2611
        %v2646 = vmul.f32 1.0, %v2645
        %v2647 = vrcp.pop %v2612
        %v2648 = vmul.f32 1.0, %v2647
        %v2649 = vrcp.pop %v2613
        %v2650 = vmul.f32 1.0, %v2649
        %v2651 = vrcp.pop %v2614
        %v2652 = vmul.f32 1.0, %v2651
        %v2653 = vrcp.pop %v2615
        %v2654 = vmul.f32 1.0, %v2653
        %v2655 = vrcp.pop %v2616
        %v2656 = vmul.f32 1.0, %v2655
        %v2657 = vrcp.pop %v2617
        %v2658 = vmul.f32 1.0, %v2657
        %v2659 = vrcp.pop %v2618
        %v2660 = vmul.f32 1.0, %v2659
        %v2661 = vrcp.pop %v2619
        %v2662 = vmul.f32 1.0, %v2661
        %v2663 = vrcp.pop %v2620
        %v2664 = vmul.f32 1.0, %v2663
        %v2665 = vrcp.pop %v2621
        %v2666 = vmul.f32 1.0, %v2665
        %v2667 = vrcp.pop %v2622
        %v2668 = vmul.f32 1.0, %v2667
        %v2669 = vrcp.pop %v2623
        %v2670 = vmul.f32 1.0, %v2669
        %v2671 = vrcp.pop %v2624
        %v2672 = vmul.f32 1.0, %v2671
        %v2673 = vrcp.pop %v2625
        %v2674 = vmul.f32 1.0, %v2673
        %v2675 = vrcp.pop %v2626
        %v2676 = vmul.f32 1.0, %v2675
        %v2677 = vrcp.pop %v2627
        %v2678 = vmul.f32 1.0, %v2677
        %v2679 = vrcp.pop %v2628
        %v2680 = vmul.f32 1.0, %v2679
        %v2681 = vtanh.pop %v2499
        %v2682 = vtanh.pop %v2501
        %v2683 = vtanh.pop %v2503
        %v2684 = vtanh.pop %v2505
        %v2685 = vtanh.pop %v2507
        %v2686 = vtanh.pop %v2509
        %v2687 = vtanh.pop %v2511
        %v2688 = vtanh.pop %v2513
        %v2689 = vtanh.pop %v2515
        %v2690 = vtanh.pop %v2517
        %v2691 = vtanh.pop %v2519
        %v2692 = vtanh.pop %v2521
        %v2693 = vtanh.pop %v2523
        %2707 = vrot.lane.b32.xlu0 %v2630, 96
        %v2708 = vpop.permute.xlu0 %2707
        %2709 = vrot.lane.b32.xlu0 %v2634, 96
        %v2710 = vpop.permute.xlu0 %2709
        %2711 = vrot.lane.b32.xlu0 %v2638, 96
        %v2712 = vpop.permute.xlu0 %2711
        %2713 = vrot.lane.b32.xlu0 %v2642, 96
        %v2714 = vpop.permute.xlu0 %2713
        %2715 = vrot.lane.b32.xlu0 %v2646, 96
        %v2716 = vpop.permute.xlu0 %2715
        %2717 = vrot.lane.b32.xlu0 %v2650, 96
        %v2718 = vpop.permute.xlu0 %2717
        %2719 = vrot.lane.b32.xlu0 %v2654, 96
        %v2720 = vpop.permute.xlu0 %2719
        %2721 = vrot.lane.b32.xlu0 %v2658, 96
        %v2722 = vpop.permute.xlu0 %2721
        %2723 = vrot.lane.b32.xlu0 %v2662, 96
        %v2724 = vpop.permute.xlu0 %2723
        %2725 = vrot.lane.b32.xlu0 %v2666, 96
        %v2726 = vpop.permute.xlu0 %2725
        %2727 = vrot.lane.b32.xlu0 %v2670, 96
        %v2728 = vpop.permute.xlu0 %2727
        %2729 = vrot.lane.b32.xlu0 %v2674, 96
        %v2730 = vpop.permute.xlu0 %2729
        %2731 = vrot.lane.b32.xlu0 %v2678, 96
        %v2732 = vpop.permute.xlu0 %2731
        %v2746 = vmul.f32 %v2681, %v2708
        %v2747 = vmul.f32 %v2682, %v2710
        %v2748 = vmul.f32 %v2683, %v2712
        %v2749 = vmul.f32 %v2684, %v2714
        %v2750 = vmul.f32 %v2685, %v2716
        %v2751 = vmul.f32 %v2686, %v2718
        %v2752 = vmul.f32 %v2687, %v2720
        %v2753 = vmul.f32 %v2688, %v2722
        %v2754 = vmul.f32 %v2689, %v2724
        %v2755 = vmul.f32 %v2690, %v2726
        %v2756 = vmul.f32 %v2691, %v2728
        %v2757 = vmul.f32 %v2692, %v2730
        %v2758 = vmul.f32 %v2693, %v2732
        %v2759 = vld [vmem:[%s447] sm:$0xff]
        %v2760 = vld [vmem:[%s447 + $0x8] sm:$0xff]
        %v2761 = vld [vmem:[%s447 + $0x10] sm:$0xff]
        %v2762 = vld [vmem:[%s447 + $0x18] sm:$0xff]
        %v2763 = vld [vmem:[%s447 + $0x20] sm:$0xff]
        %v2764 = vld [vmem:[%s447 + $0x28] sm:$0xff]
        %v2765 = vld [vmem:[%s447 + $0x30] sm:$0xff]
        %v2766 = vld [vmem:[%s447 + $0x38] sm:$0xff]
        %v2767 = vld [vmem:[%s447 + $0x40] sm:$0xff]
        %v2768 = vld [vmem:[%s447 + $0x48] sm:$0xff]
        %v2769 = vld [vmem:[%s447 + $0x50] sm:$0xff]
        %v2770 = vld [vmem:[%s447 + $0x58] sm:$0xff]
        %v2771 = vld [vmem:[%s447 + $0x60] sm:$0xff]
        %2785 = vrot.lane.b32.xlu0 %v2759, 64
        %v2786 = vpop.permute.xlu0 %2785
        %2787 = vrot.lane.b32.xlu0 %v2760, 64
        %v2788 = vpop.permute.xlu0 %2787
        %2789 = vrot.lane.b32.xlu0 %v2761, 64
        %v2790 = vpop.permute.xlu0 %2789
        %2791 = vrot.lane.b32.xlu0 %v2762, 64
        %v2792 = vpop.permute.xlu0 %2791
        %2793 = vrot.lane.b32.xlu0 %v2763, 64
        %v2794 = vpop.permute.xlu0 %2793
        %2795 = vrot.lane.b32.xlu0 %v2764, 64
        %v2796 = vpop.permute.xlu0 %2795
        %2797 = vrot.lane.b32.xlu0 %v2765, 64
        %v2798 = vpop.permute.xlu0 %2797
        %2799 = vrot.lane.b32.xlu0 %v2766, 64
        %v2800 = vpop.permute.xlu0 %2799
        %2801 = vrot.lane.b32.xlu0 %v2767, 64
        %v2802 = vpop.permute.xlu0 %2801
        %2803 = vrot.lane.b32.xlu0 %v2768, 64
        %v2804 = vpop.permute.xlu0 %2803
        %2805 = vrot.lane.b32.xlu0 %v2769, 64
        %v2806 = vpop.permute.xlu0 %2805
        %2807 = vrot.lane.b32.xlu0 %v2770, 64
        %v2808 = vpop.permute.xlu0 %2807
        %2809 = vrot.lane.b32.xlu0 %v2771, 64
        %v2810 = vpop.permute.xlu0 %2809
        %v2824 = vmul.f32 %v2630, %v2786
        %v2825 = vmul.f32 %v2634, %v2788
        %v2826 = vmul.f32 %v2638, %v2790
        %v2827 = vmul.f32 %v2642, %v2792
        %v2828 = vmul.f32 %v2646, %v2794
        %v2829 = vmul.f32 %v2650, %v2796
        %v2830 = vmul.f32 %v2654, %v2798
        %v2831 = vmul.f32 %v2658, %v2800
        %v2832 = vmul.f32 %v2662, %v2802
        %v2833 = vmul.f32 %v2666, %v2804
        %v2834 = vmul.f32 %v2670, %v2806
        %v2835 = vmul.f32 %v2674, %v2808
        %v2836 = vmul.f32 %v2678, %v2810
        %2850 = vrot.lane.b32.xlu0 %v2824, 64
        %v2851 = vpop.permute.xlu0 %2850
        %2852 = vrot.lane.b32.xlu0 %v2825, 64
        %v2853 = vpop.permute.xlu0 %2852
        %2854 = vrot.lane.b32.xlu0 %v2826, 64
        %v2855 = vpop.permute.xlu0 %2854
        %2856 = vrot.lane.b32.xlu0 %v2827, 64
        %v2857 = vpop.permute.xlu0 %2856
        %2858 = vrot.lane.b32.xlu0 %v2828, 64
        %v2859 = vpop.permute.xlu0 %2858
        %2860 = vrot.lane.b32.xlu0 %v2829, 64
        %v2861 = vpop.permute.xlu0 %2860
        %2862 = vrot.lane.b32.xlu0 %v2830, 64
        %v2863 = vpop.permute.xlu0 %2862
        %2864 = vrot.lane.b32.xlu0 %v2831, 64
        %v2865 = vpop.permute.xlu0 %2864
        %2866 = vrot.lane.b32.xlu0 %v2832, 64
        %v2867 = vpop.permute.xlu0 %2866
        %2868 = vrot.lane.b32.xlu0 %v2833, 64
        %v2869 = vpop.permute.xlu0 %2868
        %2870 = vrot.lane.b32.xlu0 %v2834, 64
        %v2871 = vpop.permute.xlu0 %2870
        %2872 = vrot.lane.b32.xlu0 %v2835, 64
        %v2873 = vpop.permute.xlu0 %2872
        %2874 = vrot.lane.b32.xlu0 %v2836, 64
        %v2875 = vpop.permute.xlu0 %2874
        %v2889 = vadd.f32 %v2746, %v2851
        %v2890 = vadd.f32 %v2747, %v2853
        %v2891 = vadd.f32 %v2748, %v2855
        %v2892 = vadd.f32 %v2749, %v2857
        %v2893 = vadd.f32 %v2750, %v2859
        %v2894 = vadd.f32 %v2751, %v2861
        %v2895 = vadd.f32 %v2752, %v2863
        %v2896 = vadd.f32 %v2753, %v2865
        %v2897 = vadd.f32 %v2754, %v2867
        %v2898 = vadd.f32 %v2755, %v2869
        %v2899 = vadd.f32 %v2756, %v2871
        %v2900 = vadd.f32 %v2757, %v2873
        %v2901 = vadd.f32 %v2758, %v2875
        %v2902 = vld [vmem:[%s461] sm:$0xff]
        %v2903 = vld [vmem:[%s461 + $0x8] sm:$0xff]
        %v2904 = vld [vmem:[%s461 + $0x10] sm:$0xff]
        %v2905 = vld [vmem:[%s461 + $0x18] sm:$0xff]
        %v2906 = vld [vmem:[%s461 + $0x20] sm:$0xff]
        %v2907 = vld [vmem:[%s461 + $0x28] sm:$0xff]
        %v2908 = vld [vmem:[%s461 + $0x30] sm:$0xff]
        %v2909 = vld [vmem:[%s461 + $0x38] sm:$0xff]
        %v2910 = vld [vmem:[%s461 + $0x40] sm:$0xff]
        %v2911 = vld [vmem:[%s461 + $0x48] sm:$0xff]
        %v2912 = vld [vmem:[%s461 + $0x50] sm:$0xff]
        %v2913 = vld [vmem:[%s461 + $0x58] sm:$0xff]
        %v2914 = vld [vmem:[%s461 + $0x60] sm:$0xff]
        %2928 = vrot.lane.b32.xlu0 %v2902, 96
        %v2929 = vpop.permute.xlu0 %2928
        %2930 = vrot.lane.b32.xlu0 %v2903, 96
        %v2931 = vpop.permute.xlu0 %2930
        %2932 = vrot.lane.b32.xlu0 %v2904, 96
        %v2933 = vpop.permute.xlu0 %2932
        %2934 = vrot.lane.b32.xlu0 %v2905, 96
        %v2935 = vpop.permute.xlu0 %2934
        %2936 = vrot.lane.b32.xlu0 %v2906, 96
        %v2937 = vpop.permute.xlu0 %2936
        %2938 = vrot.lane.b32.xlu0 %v2907, 96
        %v2939 = vpop.permute.xlu0 %2938
        %2940 = vrot.lane.b32.xlu0 %v2908, 96
        %v2941 = vpop.permute.xlu0 %2940
        %2942 = vrot.lane.b32.xlu0 %v2909, 96
        %v2943 = vpop.permute.xlu0 %2942
        %2944 = vrot.lane.b32.xlu0 %v2910, 96
        %v2945 = vpop.permute.xlu0 %2944
        %2946 = vrot.lane.b32.xlu0 %v2911, 96
        %v2947 = vpop.permute.xlu0 %2946
        %2948 = vrot.lane.b32.xlu0 %v2912, 96
        %v2949 = vpop.permute.xlu0 %2948
        %2950 = vrot.lane.b32.xlu0 %v2913, 96
        %v2951 = vpop.permute.xlu0 %2950
        %2952 = vrot.lane.b32.xlu0 %v2914, 96
        %v2953 = vpop.permute.xlu0 %2952
        %v2967 = vmul.f32 %v2630, %v2929
        %v2968 = vmul.f32 %v2634, %v2931
        %v2969 = vmul.f32 %v2638, %v2933
        %v2970 = vmul.f32 %v2642, %v2935
        %v2971 = vmul.f32 %v2646, %v2937
        %v2972 = vmul.f32 %v2650, %v2939
        %v2973 = vmul.f32 %v2654, %v2941
        %v2974 = vmul.f32 %v2658, %v2943
        %v2975 = vmul.f32 %v2662, %v2945
        %v2976 = vmul.f32 %v2666, %v2947
        %v2977 = vmul.f32 %v2670, %v2949
        %v2978 = vmul.f32 %v2674, %v2951
        %v2979 = vmul.f32 %v2678, %v2953
        %2993 = vrot.lane.b32.xlu0 %v2967, 32
        %v2994 = vpop.permute.xlu0 %2993
        %2995 = vrot.lane.b32.xlu0 %v2968, 32
        %v2996 = vpop.permute.xlu0 %2995
        %2997 = vrot.lane.b32.xlu0 %v2969, 32
        %v2998 = vpop.permute.xlu0 %2997
        %2999 = vrot.lane.b32.xlu0 %v2970, 32
        %v3000 = vpop.permute.xlu0 %2999
        %3001 = vrot.lane.b32.xlu0 %v2971, 32
        %v3002 = vpop.permute.xlu0 %3001
        %3003 = vrot.lane.b32.xlu0 %v2972, 32
        %v3004 = vpop.permute.xlu0 %3003
        %3005 = vrot.lane.b32.xlu0 %v2973, 32
        %v3006 = vpop.permute.xlu0 %3005
        %3007 = vrot.lane.b32.xlu0 %v2974, 32
        %v3008 = vpop.permute.xlu0 %3007
        %3009 = vrot.lane.b32.xlu0 %v2975, 32
        %v3010 = vpop.permute.xlu0 %3009
        %3011 = vrot.lane.b32.xlu0 %v2976, 32
        %v3012 = vpop.permute.xlu0 %3011
        %3013 = vrot.lane.b32.xlu0 %v2977, 32
        %v3014 = vpop.permute.xlu0 %3013
        %3015 = vrot.lane.b32.xlu0 %v2978, 32
        %v3016 = vpop.permute.xlu0 %3015
        %3017 = vrot.lane.b32.xlu0 %v2979, 32
        %v3018 = vpop.permute.xlu0 %3017
        %v3032 = vadd.f32 %v2889, %v2994
        %v3033 = vadd.f32 %v2890, %v2996
        %v3034 = vadd.f32 %v2891, %v2998
        %v3035 = vadd.f32 %v2892, %v3000
        %v3036 = vadd.f32 %v2893, %v3002
        %v3037 = vadd.f32 %v2894, %v3004
        %v3038 = vadd.f32 %v2895, %v3006
        %v3039 = vadd.f32 %v2896, %v3008
        %v3040 = vadd.f32 %v2897, %v3010
        %v3041 = vadd.f32 %v2898, %v3012
        %v3042 = vadd.f32 %v2899, %v3014
        %v3043 = vadd.f32 %v2900, %v3016
        %v3044 = vadd.f32 %v2901, %v3018
        %v3045 = vsel %vm616, %v3032, 0.0
        %3046 = vadd.xlane.f32.xlu0 %v3045
        %v3047 = vpop.xlane.xlu0 %3046
        %v3048 = vsel %vm616, %v3033, 0.0
        %3049 = vadd.xlane.f32.xlu0 %v3048
        %v3050 = vpop.xlane.xlu0 %3049
        %v3051 = vsel %vm616, %v3034, 0.0
        %3052 = vadd.xlane.f32.xlu0 %v3051
        %v3053 = vpop.xlane.xlu0 %3052
        %v3054 = vsel %vm616, %v3035, 0.0
        %3055 = vadd.xlane.f32.xlu0 %v3054
        %v3056 = vpop.xlane.xlu0 %3055
        %v3057 = vsel %vm616, %v3036, 0.0
        %3058 = vadd.xlane.f32.xlu0 %v3057
        %v3059 = vpop.xlane.xlu0 %3058
        %v3060 = vsel %vm616, %v3037, 0.0
        %3061 = vadd.xlane.f32.xlu0 %v3060
        %v3062 = vpop.xlane.xlu0 %3061
        %v3063 = vsel %vm616, %v3038, 0.0
        %3064 = vadd.xlane.f32.xlu0 %v3063
        %v3065 = vpop.xlane.xlu0 %3064
        %v3066 = vsel %vm616, %v3039, 0.0
        %3067 = vadd.xlane.f32.xlu0 %v3066
        %v3068 = vpop.xlane.xlu0 %3067
        %v3069 = vsel %vm616, %v3040, 0.0
        %3070 = vadd.xlane.f32.xlu0 %v3069
        %v3071 = vpop.xlane.xlu0 %3070
        %v3072 = vsel %vm616, %v3041, 0.0
        %3073 = vadd.xlane.f32.xlu0 %v3072
        %v3074 = vpop.xlane.xlu0 %3073
        %v3075 = vsel %vm616, %v3042, 0.0
        %3076 = vadd.xlane.f32.xlu0 %v3075
        %v3077 = vpop.xlane.xlu0 %3076
        %v3078 = vsel %vm616, %v3043, 0.0
        %3079 = vadd.xlane.f32.xlu0 %v3078
        %v3080 = vpop.xlane.xlu0 %3079
        %v3081 = vsel %vm616, %v3044, 0.0
        %3082 = vadd.xlane.f32.xlu0 %v3081
        %v3083 = vpop.xlane.xlu0 %3082
        %v3084 = vrcp.pop 32.0
        %v3085 = vmul.f32 %v3047, %v3084
        %v3086 = vmul.f32 %v3050, %v3084
        %v3087 = vmul.f32 %v3053, %v3084
        %v3088 = vmul.f32 %v3056, %v3084
        %v3089 = vmul.f32 %v3059, %v3084
        %v3090 = vmul.f32 %v3062, %v3084
        %v3091 = vmul.f32 %v3065, %v3084
        %v3092 = vmul.f32 %v3068, %v3084
        %v3093 = vmul.f32 %v3071, %v3084
        %v3094 = vmul.f32 %v3074, %v3084
        %v3095 = vmul.f32 %v3077, %v3084
        %v3096 = vmul.f32 %v3080, %v3084
        %v3097 = vmul.f32 %v3083, %v3084
        %v3098 = vsub.f32 %v3032, %v3085
        %v3099 = vsub.f32 %v3033, %v3086
        %v3100 = vsub.f32 %v3034, %v3087
        %v3101 = vsub.f32 %v3035, %v3088
        %v3102 = vsub.f32 %v3036, %v3089
        %v3103 = vsub.f32 %v3037, %v3090
        %v3104 = vsub.f32 %v3038, %v3091
        %v3105 = vsub.f32 %v3039, %v3092
        %v3106 = vsub.f32 %v3040, %v3093
        %v3107 = vsub.f32 %v3041, %v3094
        %v3108 = vsub.f32 %v3042, %v3095
        %v3109 = vsub.f32 %v3043, %v3096
        %v3110 = vsub.f32 %v3044, %v3097
        %v3111 = vmul.f32 %v3098, %v3098
        %v3112 = vmul.f32 %v3099, %v3099
        %v3113 = vmul.f32 %v3100, %v3100
        %v3114 = vmul.f32 %v3101, %v3101
        %v3115 = vmul.f32 %v3102, %v3102
        %v3116 = vmul.f32 %v3103, %v3103
        %v3117 = vmul.f32 %v3104, %v3104
        %v3118 = vmul.f32 %v3105, %v3105
        %v3119 = vmul.f32 %v3106, %v3106
        %v3120 = vmul.f32 %v3107, %v3107
        %v3121 = vmul.f32 %v3108, %v3108
        %v3122 = vmul.f32 %v3109, %v3109
        %v3123 = vmul.f32 %v3110, %v3110
        %v3124 = vsel %vm616, %v3111, 0.0
        %3125 = vadd.xlane.f32.xlu0 %v3124
        %v3126 = vpop.xlane.xlu0 %3125
        %v3127 = vsel %vm616, %v3112, 0.0
        %3128 = vadd.xlane.f32.xlu0 %v3127
        %v3129 = vpop.xlane.xlu0 %3128
        %v3130 = vsel %vm616, %v3113, 0.0
        %3131 = vadd.xlane.f32.xlu0 %v3130
        %v3132 = vpop.xlane.xlu0 %3131
        %v3133 = vsel %vm616, %v3114, 0.0
        %3134 = vadd.xlane.f32.xlu0 %v3133
        %v3135 = vpop.xlane.xlu0 %3134
        %v3136 = vsel %vm616, %v3115, 0.0
        %3137 = vadd.xlane.f32.xlu0 %v3136
        %v3138 = vpop.xlane.xlu0 %3137
        %v3139 = vsel %vm616, %v3116, 0.0
        %3140 = vadd.xlane.f32.xlu0 %v3139
        %v3141 = vpop.xlane.xlu0 %3140
        %v3142 = vsel %vm616, %v3117, 0.0
        %3143 = vadd.xlane.f32.xlu0 %v3142
        %v3144 = vpop.xlane.xlu0 %3143
        %v3145 = vsel %vm616, %v3118, 0.0
        %3146 = vadd.xlane.f32.xlu0 %v3145
        %v3147 = vpop.xlane.xlu0 %3146
        %v3148 = vsel %vm616, %v3119, 0.0
        %3149 = vadd.xlane.f32.xlu0 %v3148
        %v3150 = vpop.xlane.xlu0 %3149
        %v3151 = vsel %vm616, %v3120, 0.0
        %3152 = vadd.xlane.f32.xlu0 %v3151
        %v3153 = vpop.xlane.xlu0 %3152
        %v3154 = vsel %vm616, %v3121, 0.0
        %3155 = vadd.xlane.f32.xlu0 %v3154
        %v3156 = vpop.xlane.xlu0 %3155
        %v3157 = vsel %vm616, %v3122, 0.0
        %3158 = vadd.xlane.f32.xlu0 %v3157
        %v3159 = vpop.xlane.xlu0 %3158
        %v3160 = vsel %vm616, %v3123, 0.0
        %3161 = vadd.xlane.f32.xlu0 %v3160
        %v3162 = vpop.xlane.xlu0 %3161
        %v3163 = vmul.f32 %v3126, %v3084
        %v3164 = vmul.f32 %v3129, %v3084
        %v3165 = vmul.f32 %v3132, %v3084
        %v3166 = vmul.f32 %v3135, %v3084
        %v3167 = vmul.f32 %v3138, %v3084
        %v3168 = vmul.f32 %v3141, %v3084
        %v3169 = vmul.f32 %v3144, %v3084
        %v3170 = vmul.f32 %v3147, %v3084
        %v3171 = vmul.f32 %v3150, %v3084
        %v3172 = vmul.f32 %v3153, %v3084
        %v3173 = vmul.f32 %v3156, %v3084
        %v3174 = vmul.f32 %v3159, %v3084
        %v3175 = vmul.f32 %v3162, %v3084
        %v3176 = vadd.f32 %v3163, 1e-05
        %v3177 = vadd.f32 %v3164, 1e-05
        %v3178 = vadd.f32 %v3165, 1e-05
        %v3179 = vadd.f32 %v3166, 1e-05
        %v3180 = vadd.f32 %v3167, 1e-05
        %v3181 = vadd.f32 %v3168, 1e-05
        %v3182 = vadd.f32 %v3169, 1e-05
        %v3183 = vadd.f32 %v3170, 1e-05
        %v3184 = vadd.f32 %v3171, 1e-05
        %v3185 = vadd.f32 %v3172, 1e-05
        %v3186 = vadd.f32 %v3173, 1e-05
        %v3187 = vadd.f32 %v3174, 1e-05
        %v3188 = vadd.f32 %v3175, 1e-05
        %v3189 = vrsqrt.pop %v3176
        %v3190 = vrsqrt.pop %v3177
        %v3191 = vrsqrt.pop %v3178
        %v3192 = vrsqrt.pop %v3179
        %v3193 = vrsqrt.pop %v3180
        %v3194 = vrsqrt.pop %v3181
        %v3195 = vrsqrt.pop %v3182
        %v3196 = vrsqrt.pop %v3183
        %v3197 = vrsqrt.pop %v3184
        %v3198 = vrsqrt.pop %v3185
        %v3199 = vrsqrt.pop %v3186
        %v3200 = vrsqrt.pop %v3187
        %v3201 = vrsqrt.pop %v3188
        %v3202 = vmul.f32 %v3098, %v3189
        %v3203 = vmul.f32 %v3099, %v3190
        %v3204 = vmul.f32 %v3100, %v3191
        %v3205 = vmul.f32 %v3101, %v3192
        %v3206 = vmul.f32 %v3102, %v3193
        %v3207 = vmul.f32 %v3103, %v3194
        %v3208 = vmul.f32 %v3104, %v3195
        %v3209 = vmul.f32 %v3105, %v3196
        %v3210 = vmul.f32 %v3106, %v3197
        %v3211 = vmul.f32 %v3107, %v3198
        %v3212 = vmul.f32 %v3108, %v3199
        %v3213 = vmul.f32 %v3109, %v3200
        %v3214 = vmul.f32 %v3110, %v3201
        %v3215 = vtanh.pop %v3202
        %v3216 = vtanh.pop %v3203
        %v3217 = vtanh.pop %v3204
        %v3218 = vtanh.pop %v3205
        %v3219 = vtanh.pop %v3206
        %v3220 = vtanh.pop %v3207
        %v3221 = vtanh.pop %v3208
        %v3222 = vtanh.pop %v3209
        %v3223 = vtanh.pop %v3210
        %v3224 = vtanh.pop %v3211
        %v3225 = vtanh.pop %v3212
        %v3226 = vtanh.pop %v3213
        %v3227 = vtanh.pop %v3214
        %v3228 = vmul.f32 %v2632, %v3215
        %v3229 = vmul.f32 %v2636, %v3216
        %v3230 = vmul.f32 %v2640, %v3217
        %v3231 = vmul.f32 %v2644, %v3218
        %v3232 = vmul.f32 %v2648, %v3219
        %v3233 = vmul.f32 %v2652, %v3220
        %v3234 = vmul.f32 %v2656, %v3221
        %v3235 = vmul.f32 %v2660, %v3222
        %v3236 = vmul.f32 %v2664, %v3223
        %v3237 = vmul.f32 %v2668, %v3224
        %v3238 = vmul.f32 %v2672, %v3225
        %v3239 = vmul.f32 %v2676, %v3226
        %v3240 = vmul.f32 %v2680, %v3227
        %3254 = vrot.lane.b32.xlu0 %v3202, 32
        %v3255 = vpop.permute.xlu0 %3254
        %3256 = vrot.lane.b32.xlu0 %v3203, 32
        %v3257 = vpop.permute.xlu0 %3256
        %3258 = vrot.lane.b32.xlu0 %v3204, 32
        %v3259 = vpop.permute.xlu0 %3258
        %3260 = vrot.lane.b32.xlu0 %v3205, 32
        %v3261 = vpop.permute.xlu0 %3260
        %3262 = vrot.lane.b32.xlu0 %v3206, 32
        %v3263 = vpop.permute.xlu0 %3262
        %3264 = vrot.lane.b32.xlu0 %v3207, 32
        %v3265 = vpop.permute.xlu0 %3264
        %3266 = vrot.lane.b32.xlu0 %v3208, 32
        %v3267 = vpop.permute.xlu0 %3266
        %3268 = vrot.lane.b32.xlu0 %v3209, 32
        %v3269 = vpop.permute.xlu0 %3268
        %3270 = vrot.lane.b32.xlu0 %v3210, 32
        %v3271 = vpop.permute.xlu0 %3270
        %3272 = vrot.lane.b32.xlu0 %v3211, 32
        %v3273 = vpop.permute.xlu0 %3272
        %3274 = vrot.lane.b32.xlu0 %v3212, 32
        %v3275 = vpop.permute.xlu0 %3274
        %3276 = vrot.lane.b32.xlu0 %v3213, 32
        %v3277 = vpop.permute.xlu0 %3276
        %3278 = vrot.lane.b32.xlu0 %v3214, 32
        %v3279 = vpop.permute.xlu0 %3278
        %v3293 = vsel %vm616, %v3228, %v3255
        %v3294 = vsel %vm616, %v3229, %v3257
        %v3295 = vsel %vm616, %v3230, %v3259
        %v3296 = vsel %vm616, %v3231, %v3261
        %v3297 = vsel %vm616, %v3232, %v3263
        %v3298 = vsel %vm616, %v3233, %v3265
        %v3299 = vsel %vm616, %v3234, %v3267
        %v3300 = vsel %vm616, %v3235, %v3269
        %v3301 = vsel %vm616, %v3236, %v3271
        %v3302 = vsel %vm616, %v3237, %v3273
        %v3303 = vsel %vm616, %v3238, %v3275
        %v3304 = vsel %vm616, %v3239, %v3277
        %v3305 = vsel %vm616, %v3240, %v3279
        %v3306 = vsel %vm630, %v3293, 0.0
        %v3307 = vsel %vm630, %v3294, 0.0
        %v3308 = vsel %vm630, %v3295, 0.0
        %v3309 = vsel %vm630, %v3296, 0.0
        %v3310 = vsel %vm630, %v3297, 0.0
        %v3311 = vsel %vm630, %v3298, 0.0
        %v3312 = vsel %vm630, %v3299, 0.0
        %v3313 = vsel %vm630, %v3300, 0.0
        %v3314 = vsel %vm630, %v3301, 0.0
        %v3315 = vsel %vm630, %v3302, 0.0
        %v3316 = vsel %vm630, %v3303, 0.0
        %v3317 = vsel %vm630, %v3304, 0.0
        %v3318 = vsel %vm630, %v3305, 0.0
        %3319 = vst [vmem:[%s396] sm:$0xff] %v3306
        %3320 = vst [vmem:[%s396 + $0x8] sm:$0xff] %v3307
        %3321 = vst [vmem:[%s396 + $0x10] sm:$0xff] %v3308
        %3322 = vst [vmem:[%s396 + $0x18] sm:$0xff] %v3309
        %3323 = vst [vmem:[%s396 + $0x20] sm:$0xff] %v3310
        %3324 = vst [vmem:[%s396 + $0x28] sm:$0xff] %v3311
        %3325 = vst [vmem:[%s396 + $0x30] sm:$0xff] %v3312
        %3326 = vst [vmem:[%s396 + $0x38] sm:$0xff] %v3313
        %3327 = vst [vmem:[%s396 + $0x40] sm:$0xff] %v3314
        %3328 = vst [vmem:[%s396 + $0x48] sm:$0xff] %v3315
        %3329 = vst [vmem:[%s396 + $0x50] sm:$0xff] %v3316
        %3330 = vst [vmem:[%s396 + $0x58] sm:$0xff] %v3317
        %3331 = vst [vmem:[%s396 + $0x60] sm:$0xff] %v3318
        %s3332 = sand.u32 %s201, 1
        %s3333 = scalar_lea.sflag [#allocation3], %s3332
        %s3334 = sand.u32 %s201, 1
        %s3335 = smul.addr %s3334, 104
        %s3336 = scalar_lea.vmem [#allocation2], %s3335
        // Predicated region
        $region49: #{tpu_custom_call.1} parent=47 // pred_check
          %p3337 = pneg %p211
        $region50: #{tpu_custom_call.1} parent=47 // pred_check_branch
          %3339 = sbr.rel (%p3337) target = $region52
        $region51: #{tpu_custom_call.1} parent=47 // pred_region
          %s3340 = smul.u32 13, %s21
          %s3341 = ssub.s32 25, %s3340
          %p3342 = scmp.lt.s32.totalorder %s3341, 13
          %s3343 = scalar_select %p3342, %s3341, 13
          %s3344 = smul.u32 128, %s3343
          %s3346 = ssub.s32 1664, %s3344
          %3347 = vsyncadd %s3333, %s3346
          %p3348 = scmp.ne.s32.totalorder 0, %s3344
          %s3349 = smul.addr %s3340, 128
          %s3350 = scalar_lea.hbm %s7, %s3349
          %s3351 = smul.u32 8, %s3343
          %s3352 = sshll.u32 %s3336, 4
          %s3353 = int_to_ptr.vmem [resolvable:$true] %s3352
          %s3354 = sshll.u32 %s3351, 4
          %3358 = dma.vmem_to_hbm [thread:$0]  (%p3348), %s3353, %s3354, %s3350, %s3333, 128, 128, 8
        $region52: #{tpu_custom_call.1} parent=47 // pred_fallthru
          _
      $region48: #{tpu_custom_call.1} parent=5 // pred_fallthru
        _
      %p3359 = scmp.le.s32.totalorder 2, %s16
      // Predicated region
      $region53: #{tpu_custom_call.1} parent=5 // pred_check
        %p3360 = pneg %p3359
      $region54: #{tpu_custom_call.1} parent=5 // pred_check_branch
        %3362 = sbr.rel (%p3360) target = $region56
      $region55: #{tpu_custom_call.1} parent=5 // pred_region
        %s3363 = ssub.s32 %s16, 2
        // Predicated region
        $region57: #{tpu_custom_call.1} parent=55 // pred_check
          %p3364 = pneg %p217
        $region58: #{tpu_custom_call.1} parent=55 // pred_check_branch
          %3366 = sbr.rel (%p3364) target = $region60
        $region59: #{tpu_custom_call.1} parent=55 // pred_region
          %s3367 = sand.u32 %s202, 1
          %s3368 = scalar_lea.sflag [#allocation3], %s3367
          %s3369 = sand.u32 %s202, 1
          %s3370 = smul.addr %s3369, 104
          %s3371 = scalar_lea.vmem [#allocation2], %s3370
          %3372 = dma.done %s3368, 1664
        $region60: #{tpu_custom_call.1} parent=55 // pred_fallthru
          _
      $region56: #{tpu_custom_call.1} parent=5 // pred_fallthru
        _
    $region6: #{tpu_custom_call.1} parent=1 // loop_footer
      %s20 = sadd.s32 1, %s16
    $region7: #{tpu_custom_call.1} parent=1 // loop_footer_branch
      %15 = sbr.rel target = $region3
    $region8: #{tpu_custom_call.1} parent=1 // loop_exit
      _
    %3373 = vsyncpa [#allocation3], 1
    %s3374 = scalar_lea.sflag [#allocation3], 1
    %3375 = vsyncpa %s3374, 1

</llo_original>
